<compile_context>
chip_gen: v5e
topology: v5e:2x2
jax: 0.10.0
libtpu: 0.0.40
codegen_flags: <defaults>
</compile_context>

<pallas_src>
import functools

import jax
import jax.numpy as jnp
from jax import lax
from jax.experimental import pallas as pl
from jax.experimental.pallas import tpu as pltpu

HEAD_NUMS = 4
LAYERS = [1, 25, 25, 25, 25]   # per-head NeuralNet widths (PyTorch spec)
H = LAYERS[1]                  # 25 (true per-head width)
HP = 32                        # padded per-head width
HIDDEN = HP * HEAD_NUMS        # 128 = one lane-width


# ----------------------------------------------------------------------------
# Pallas kernel: fused multi-head MLP forward for one tile of rows.
# ----------------------------------------------------------------------------
def _mhpinn_kernel(r_ref,
                   w1_ref, b1_ref,
                   w2_ref, b2_ref,
                   w3_ref, b3_ref,
                   wf_ref, bf_ref,
                   o_ref, *, bf16_tanh=False):
    def act(z):
        if bf16_tanh:
            # EUP is bf16-capable on v6e/v7x -> ~2x transcendental throughput.
            return jnp.tanh(z.astype(jnp.bfloat16)).astype(jnp.float32)
        return jnp.tanh(z)

    r = r_ref[...]                                              # (TM, 1)

    # fused head input layers: outer product on the VPU (avoids a K=1 matmul)
    h = act(r * w1_ref[...] + b1_ref[...])                      # (TM, 128)
    # hidden_layer1 (block-diagonal across heads)
    h = act(jnp.dot(h, w2_ref[...],
                    preferred_element_type=jnp.float32) + b2_ref[...])
    # hidden_layer2 (block-diagonal across heads)
    h = act(jnp.dot(h, w3_ref[...],
                    preferred_element_type=jnp.float32) + b3_ref[...])
    # (per-head output layer ∘ end_net) fused: (TM,128) @ (128,1) + (1,1)
    y = jnp.dot(h, wf_ref[...],
                preferred_element_type=jnp.float32) + bf_ref[...]
    o_ref[...] = y.astype(o_ref.dtype)


def mhpinn_forward(r, fused_params, *, tile_m=1024, bf16_tanh=False):
    """r: (N, 1) f32.  Returns (N, 1) f32.  Handles N not multiple of tile_m."""
    (w1, b1, w2, b2, w3, b3, wf, bf) = fused_params
    n = r.shape[0]
    n_tiles = pl.cdiv(n, tile_m)
    n_pad = n_tiles * tile_m
    if n_pad != n:
        r = jnp.pad(r, ((0, n_pad - n), (0, 0)))

    full = lambda arr: pl.BlockSpec(arr.shape, lambda i: (0,) * arr.ndim)
    kernel = functools.partial(_mhpinn_kernel, bf16_tanh=bf16_tanh)

    out = pl.pallas_call(
        kernel,
        out_shape=jax.ShapeDtypeStruct((n_pad, 1), jnp.float32),
        grid_spec=pltpu.PrefetchScalarGridSpec(
            num_scalar_prefetch=0,
            grid=(n_tiles,),
            in_specs=[
                pl.BlockSpec((tile_m, 1), lambda i: (i, 0)),   # r tile
                full(w1), full(b1),
                full(w2), full(b2),
                full(w3), full(b3),
                full(wf), full(bf),
            ],
            out_specs=pl.BlockSpec((tile_m, 1), lambda i: (i, 0)),
        ),
        compiler_params=pltpu.CompilerParams(
            dimension_semantics=("parallel",),
            vmem_limit_bytes=64 << 20),
    )(r, w1, b1, w2, b2, w3, b3, wf, bf)
    return out[:n]


# ----------------------------------------------------------------------------
# Deterministic parameter construction (PyTorch-Linear-style uniform init).
# ----------------------------------------------------------------------------
def _init_linear(key, fan_in, fan_out):
    kw, kb = jax.random.split(key)
    bound = 1.0 / (float(fan_in) ** 0.5)
    w = jax.random.uniform(kw, (fan_in, fan_out), jnp.float32, -bound, bound)
    b = jax.random.uniform(kb, (fan_out,), jnp.float32, -bound, bound)
    return w, b


def make_raw_params(key):
    """Per-head weights exactly mirroring the PyTorch module structure."""
    keys = jax.random.split(key, HEAD_NUMS * 4 + 1)
    heads = []
    for hd in range(HEAD_NUMS):
        k = keys[hd * 4:(hd + 1) * 4]
        w1, b1 = _init_linear(k[0], LAYERS[0], H)
        w2, b2 = _init_linear(k[1], H, H)
        w3, b3 = _init_linear(k[2], H, H)
        w4, b4 = _init_linear(k[3], H, H)
        heads.append((w1, b1, w2, b2, w3, b3, w4, b4))
    # end_net = NeuralNet([100, 1]); forward for len==2 uses output_layer only.
    we, be = _init_linear(keys[-1], H * HEAD_NUMS, 1)   # (100, 1), (1,)
    return heads, we, be


def _pad2(x, rows, cols):
    return jnp.pad(x, ((0, rows - x.shape[0]), (0, cols - x.shape[1])))


def _block_diag(blocks):
    n = len(blocks)
    p, q = blocks[0].shape
    out = jnp.zeros((n * p, n * q), jnp.float32)
    for i, blk in enumerate(blocks):
        out = out.at[i * p:(i + 1) * p, i * q:(i + 1) * q].set(blk)
    return out


def fuse_params(raw_params):
    """Pad each head 25 -> 32, fuse heads block-diagonally, fold end_net into
    the per-head output layer (exact: no nonlinearity in between)."""
    heads, we, be = raw_params

    w1s = [_pad2(h[0], 1, HP) for h in heads]                       # (1,32)
    b1s = [jnp.pad(h[1], (0, HP - H)) for h in heads]
    w2s = [_pad2(h[2], HP, HP) for h in heads]
    b2s = [jnp.pad(h[3], (0, HP - H)) for h in heads]
    w3s = [_pad2(h[4], HP, HP) for h in heads]
    b3s = [jnp.pad(h[5], (0, HP - H)) for h in heads]
    w4s = [_pad2(h[6], HP, HP) for h in heads]
    b4s = [jnp.pad(h[7], (0, HP - H)) for h in heads]

    w1 = jnp.concatenate(w1s, axis=1)                               # (1, 128)
    b1 = jnp.concatenate(b1s, axis=0)[None, :]                      # (1, 128)
    w2 = _block_diag(w2s)                                           # (128, 128)
    b2 = jnp.concatenate(b2s, axis=0)[None, :]
    w3 = _block_diag(w3s)
    b3 = jnp.concatenate(b3s, axis=0)[None, :]
    w4 = _block_diag(w4s)
    b4 = jnp.concatenate(b4s, axis=0)[None, :]

    # pad end_net rows to the padded head layout (25 -> 32 per head chunk)
    we_pad = jnp.concatenate(
        [jnp.pad(we[i * H:(i + 1) * H, :], ((0, HP - H), (0, 0)))
         for i in range(HEAD_NUMS)], axis=0)                        # (128, 1)

    # fold end_net into layer 4 (no tanh in between -> exact)
    wf = jnp.dot(w4, we_pad, precision=lax.Precision.HIGHEST)       # (128, 1)
    bf = jnp.dot(b4, we_pad, precision=lax.Precision.HIGHEST) + be[None, :]  # (1,1)

    return (w1, b1, w2, b2, w3, b3, wf, bf)


# ----------------------------------------------------------------------------
# Pure-JAX reference (mirrors the PyTorch MHPINN.forward exactly, per head).
# ----------------------------------------------------------------------------
def reference_forward(r, raw_params):
    heads, we, be = raw_params
    hp = lax.Precision.HIGHEST
    outs = []
    for (w1, b1, w2, b2, w3, b3, w4, b4) in heads:
        h = jnp.tanh(jnp.dot(r, w1, precision=hp) + b1)
        h = jnp.tanh(jnp.dot(h, w2, precision=hp) + b2)
        h = jnp.tanh(jnp.dot(h, w3, precision=hp) + b3)
        outs.append(jnp.dot(h, w4, precision=hp) + b4)
    cat = jnp.concatenate(outs, axis=1)                             # (N, 100)
    return jnp.dot(cat, we, precision=hp) + be                      # (N, 1)


if __name__ == "__main__":
    key = jax.random.PRNGKey(0)
    k_param, k_x = jax.random.split(key)

    raw = make_raw_params(k_param)
    fused = fuse_params(raw)

    # input consistent with the module: r of shape (N, 1) in [-a/2, a/2]
    N = 5000     # matches Ntest in the spec; not a multiple of tile_m (padded)
    a = 2.0
    r = jax.random.uniform(k_x, (N, 1), jnp.float32, -a / 2, a / 2)

    # TODO(synk): set bf16_tanh=True on v6e/v7x if the PINN accuracy budget allows.
    y = mhpinn_forward(r, fused, tile_m=1024, bf16_tanh=False)
    y = jax.block_until_ready(y)

    y_ref = reference_forward(r, raw)
    assert y.shape == (N, 1)
    assert jnp.allclose(y, y_ref, atol=1e-5, rtol=1e-5), (
        float(jnp.max(jnp.abs(y - y_ref))))

    print("KERNEL_OK")
</pallas_src>

<mosaic_0001>
module attributes {stable_mosaic.version = 11 : i64} {
  func.func @_mhpinn_kernel(%arg0: i32, %arg1: memref<1024x1xf32, #tpu.memory_space<vmem>>, %arg2: memref<1x128xf32, #tpu.memory_space<vmem>>, %arg3: memref<1x128xf32, #tpu.memory_space<vmem>>, %arg4: memref<128x128xf32, #tpu.memory_space<vmem>>, %arg5: memref<1x128xf32, #tpu.memory_space<vmem>>, %arg6: memref<128x128xf32, #tpu.memory_space<vmem>>, %arg7: memref<1x128xf32, #tpu.memory_space<vmem>>, %arg8: memref<128x1xf32, #tpu.memory_space<vmem>>, %arg9: memref<1x1xf32, #tpu.memory_space<vmem>>, %arg10: memref<1024x1xf32, #tpu.memory_space<vmem>>) attributes {dimension_semantics = [#tpu.dimension_semantics<parallel>], iteration_bounds = array<i64: 5>, scalar_prefetch = 0 : i64, scratch_operands = 0 : i64, tpu.core_type = #tpu.core_type<tc>, window_params = [{transform_indices = @transform_0, window_bounds = array<i64: 1024, 1>}, {pipeline_mode = #tpu.pipeline_mode<synchronous>, transform_indices = @transform_1, window_bounds = array<i64: 1, 128>}, {pipeline_mode = #tpu.pipeline_mode<synchronous>, transform_indices = @transform_2, window_bounds = array<i64: 1, 128>}, {pipeline_mode = #tpu.pipeline_mode<synchronous>, transform_indices = @transform_3, window_bounds = array<i64: 128, 128>}, {pipeline_mode = #tpu.pipeline_mode<synchronous>, transform_indices = @transform_4, window_bounds = array<i64: 1, 128>}, {pipeline_mode = #tpu.pipeline_mode<synchronous>, transform_indices = @transform_5, window_bounds = array<i64: 128, 128>}, {pipeline_mode = #tpu.pipeline_mode<synchronous>, transform_indices = @transform_6, window_bounds = array<i64: 1, 128>}, {pipeline_mode = #tpu.pipeline_mode<synchronous>, transform_indices = @transform_7, window_bounds = array<i64: 128, 1>}, {pipeline_mode = #tpu.pipeline_mode<synchronous>, transform_indices = @transform_8, window_bounds = array<i64: 1, 1>}, {transform_indices = @transform_9, window_bounds = array<i64: 1024, 1>}]} {
    %c0 = arith.constant 0 : index
    %c0_0 = arith.constant 0 : index
    %0 = vector.load %arg1[%c0, %c0_0] : memref<1024x1xf32, #tpu.memory_space<vmem>>, vector<1024x1xf32>
    %c0_1 = arith.constant 0 : index
    %c0_2 = arith.constant 0 : index
    %1 = vector.load %arg2[%c0_1, %c0_2] : memref<1x128xf32, #tpu.memory_space<vmem>>, vector<1x128xf32>
    %2 = vector.broadcast %0 : vector<1024x1xf32> to vector<1024x128xf32>
    %3 = vector.broadcast %1 : vector<1x128xf32> to vector<1024x128xf32>
    %4 = arith.mulf %2, %3 : vector<1024x128xf32>
    %c0_3 = arith.constant 0 : index
    %c0_4 = arith.constant 0 : index
    %5 = vector.load %arg3[%c0_3, %c0_4] : memref<1x128xf32, #tpu.memory_space<vmem>>, vector<1x128xf32>
    %6 = vector.broadcast %5 : vector<1x128xf32> to vector<1024x128xf32>
    %7 = arith.addf %4, %6 : vector<1024x128xf32>
    %8 = math.tanh %7 : vector<1024x128xf32>
    %c0_5 = arith.constant 0 : index
    %c0_6 = arith.constant 0 : index
    %9 = vector.load %arg4[%c0_5, %c0_6] : memref<128x128xf32, #tpu.memory_space<vmem>>, vector<128x128xf32>
    %cst = arith.constant dense<0.000000e+00> : vector<1024x128xf32>
    %10 = tpu.matmul %8, %9, %cst {dimension_numbers = #tpu.dot_dimension_numbers<[1], [0], [0], [1], [0, 0, 1, 1], [], []>} : vector<1024x128xf32>, vector<128x128xf32>, vector<1024x128xf32> -> vector<1024x128xf32>
    %c0_7 = arith.constant 0 : index
    %c0_8 = arith.constant 0 : index
    %11 = vector.load %arg5[%c0_7, %c0_8] : memref<1x128xf32, #tpu.memory_space<vmem>>, vector<1x128xf32>
    %12 = vector.broadcast %11 : vector<1x128xf32> to vector<1024x128xf32>
    %13 = arith.addf %10, %12 : vector<1024x128xf32>
    %14 = math.tanh %13 : vector<1024x128xf32>
    %c0_9 = arith.constant 0 : index
    %c0_10 = arith.constant 0 : index
    %15 = vector.load %arg6[%c0_9, %c0_10] : memref<128x128xf32, #tpu.memory_space<vmem>>, vector<128x128xf32>
    %cst_11 = arith.constant dense<0.000000e+00> : vector<1024x128xf32>
    %16 = tpu.matmul %14, %15, %cst_11 {dimension_numbers = #tpu.dot_dimension_numbers<[1], [0], [0], [1], [0, 0, 1, 1], [], []>} : vector<1024x128xf32>, vector<128x128xf32>, vector<1024x128xf32> -> vector<1024x128xf32>
    %c0_12 = arith.constant 0 : index
    %c0_13 = arith.constant 0 : index
    %17 = vector.load %arg7[%c0_12, %c0_13] : memref<1x128xf32, #tpu.memory_space<vmem>>, vector<1x128xf32>
    %18 = vector.broadcast %17 : vector<1x128xf32> to vector<1024x128xf32>
    %19 = arith.addf %16, %18 : vector<1024x128xf32>
    %20 = math.tanh %19 : vector<1024x128xf32>
    %c0_14 = arith.constant 0 : index
    %c0_15 = arith.constant 0 : index
    %21 = vector.load %arg8[%c0_14, %c0_15] : memref<128x1xf32, #tpu.memory_space<vmem>>, vector<128x1xf32>
    %cst_16 = arith.constant dense<0.000000e+00> : vector<1024x1xf32>
    %22 = tpu.matmul %20, %21, %cst_16 {dimension_numbers = #tpu.dot_dimension_numbers<[1], [0], [0], [1], [0, 0, 1, 1], [], []>} : vector<1024x128xf32>, vector<128x1xf32>, vector<1024x1xf32> -> vector<1024x1xf32>
    %c0_17 = arith.constant 0 : index
    %c0_18 = arith.constant 0 : index
    %23 = vector.load %arg9[%c0_17, %c0_18] : memref<1x1xf32, #tpu.memory_space<vmem>>, vector<1x1xf32>
    %24 = vector.broadcast %23 : vector<1x1xf32> to vector<1024x1xf32>
    %25 = arith.addf %22, %24 : vector<1024x1xf32>
    %c0_19 = arith.constant 0 : index
    %c0_20 = arith.constant 0 : index
    %26 = vector.load %arg10[%c0_19, %c0_20] : memref<1024x1xf32, #tpu.memory_space<vmem>>, vector<1024x1xf32>
    tpu.vector_store %arg10[%c0_19, %c0_20], %25 {strides = array<i32>} : memref<1024x1xf32, #tpu.memory_space<vmem>>, vector<1024x1xf32>,
    return
  }
  func.func @transform_0(%arg0: i32) -> (i32, i32) {
    %c0_i32 = arith.constant 0 : i32
    %c0_i32_0 = arith.constant 0 : i32
    return %arg0, %c0_i32 : i32, i32
  }
  func.func @transform_1(%arg0: i32) -> (i32, i32) {
    %c0_i32 = arith.constant 0 : i32
    %c0_i32_0 = arith.constant 0 : i32
    %c0_i32_1 = arith.constant 0 : i32
    return %c0_i32, %c0_i32_0 : i32, i32
  }
  func.func @transform_2(%arg0: i32) -> (i32, i32) {
    %c0_i32 = arith.constant 0 : i32
    %c0_i32_0 = arith.constant 0 : i32
    %c0_i32_1 = arith.constant 0 : i32
    return %c0_i32, %c0_i32_0 : i32, i32
  }
  func.func @transform_3(%arg0: i32) -> (i32, i32) {
    %c0_i32 = arith.constant 0 : i32
    %c0_i32_0 = arith.constant 0 : i32
    %c0_i32_1 = arith.constant 0 : i32
    return %c0_i32, %c0_i32_0 : i32, i32
  }
  func.func @transform_4(%arg0: i32) -> (i32, i32) {
    %c0_i32 = arith.constant 0 : i32
    %c0_i32_0 = arith.constant 0 : i32
    %c0_i32_1 = arith.constant 0 : i32
    return %c0_i32, %c0_i32_0 : i32, i32
  }
  func.func @transform_5(%arg0: i32) -> (i32, i32) {
    %c0_i32 = arith.constant 0 : i32
    %c0_i32_0 = arith.constant 0 : i32
    %c0_i32_1 = arith.constant 0 : i32
    return %c0_i32, %c0_i32_0 : i32, i32
  }
  func.func @transform_6(%arg0: i32) -> (i32, i32) {
    %c0_i32 = arith.constant 0 : i32
    %c0_i32_0 = arith.constant 0 : i32
    %c0_i32_1 = arith.constant 0 : i32
    return %c0_i32, %c0_i32_0 : i32, i32
  }
  func.func @transform_7(%arg0: i32) -> (i32, i32) {
    %c0_i32 = arith.constant 0 : i32
    %c0_i32_0 = arith.constant 0 : i32
    %c0_i32_1 = arith.constant 0 : i32
    return %c0_i32, %c0_i32_0 : i32, i32
  }
  func.func @transform_8(%arg0: i32) -> (i32, i32) {
    %c0_i32 = arith.constant 0 : i32
    %c0_i32_0 = arith.constant 0 : i32
    %c0_i32_1 = arith.constant 0 : i32
    return %c0_i32, %c0_i32_0 : i32, i32
  }
  func.func @transform_9(%arg0: i32) -> (i32, i32) {
    %c0_i32 = arith.constant 0 : i32
    %c0_i32_0 = arith.constant 0 : i32
    return %arg0, %c0_i32 : i32, i32
  }
}

</mosaic_0001>

<llo_original>
// kernel: tpu_custom_call.1
$region0: #{tpu_custom_call.1}
  #allocation0 [shape = 'u32[]', space=smem, size = 0x4, offset = 0x4, fixed_abs, tag = 'smem constant byte address 0x4 - core index']
  #allocation1 [shape = 'u32[72,128]{1,0:T(1,128)}', space=vmem, size = 0x9000, scoped, tag = 'internal scratch']
  #allocation2 [shape = 'f32[1,1]{1,0:T(1,128)S(1)}', space=vmem, size = 0x200, scoped, tag = 'scoped memory for tpu_custom_call.1']
  %s0 = inlined_call_operand.vmem [shape: f32[5120,1], index: 0, kind: input, shape index: {}]
  %s1 = inlined_call_operand.vmem [shape: f32[1,128], index: 1, kind: input, shape index: {}]
  %s2 = inlined_call_operand.vmem [shape: f32[1,128], index: 2, kind: input, shape index: {}]
  %s3 = inlined_call_operand.vmem [shape: f32[128,128], index: 3, kind: input, shape index: {}]
  %s4 = inlined_call_operand.vmem [shape: f32[1,128], index: 4, kind: input, shape index: {}]
  %s5 = inlined_call_operand.vmem [shape: f32[128,128], index: 5, kind: input, shape index: {}]
  %s6 = inlined_call_operand.vmem [shape: f32[1,128], index: 6, kind: input, shape index: {}]
  %s7 = inlined_call_operand.vmem [shape: f32[128,1], index: 7, kind: input, shape index: {}]
  %s8 = inlined_call_operand.<no memory space> [shape: f32[1,1], index: 8, kind: input, shape index: {}]
  %s9 = inlined_call_operand.vmem [shape: f32[5120,1], index: 9, kind: output, shape index: {}]
  %s10 = sld [smem:[#allocation0]]
  $region69: #{tpu_custom_call.1} parent=0
    _
  %s12 = ssub.s32 1, %s10
  %s13 = scalar_select 0, %s12, %s10
  %v14 = vstv %s8
  %15 = vst [vmem:[#allocation2] sm:$0x1] %v14
  loop: start=0, step=1, limit=7
  $region2: #{tpu_custom_call.1} parent=0 // loop_pre_header
    _
  $region3: #{tpu_custom_call.1} parent=0 // loop_header
    %s17 = sphi 0, %s21
    %p18 = scmp.ge.s32.totalorder %s17, 7
    %s27 = sphi 0, %s29
    %s30 = sphi 0, %s27
    %s31 = sphi 0, %s30
    %s47 = sphi 0, %s31
    %s51 = sphi 0, %s51
    %s53 = sphi 0, %s51
    %s54 = sphi 0, %s53
    %s68 = sphi 0, %s54
    %s72 = sphi 0, %s72
    %s74 = sphi 0, %s72
    %s75 = sphi 0, %s74
    %s89 = sphi 0, %s75
    %s93 = sphi 0, %s93
    %s95 = sphi 0, %s93
    %s96 = sphi 0, %s95
    %s110 = sphi 0, %s96
    %s114 = sphi 0, %s114
    %s116 = sphi 0, %s114
    %s117 = sphi 0, %s116
    %s131 = sphi 0, %s117
    %s135 = sphi 0, %s135
    %s137 = sphi 0, %s135
    %s138 = sphi 0, %s137
    %s152 = sphi 0, %s138
    %s156 = sphi 0, %s156
    %s158 = sphi 0, %s156
    %s159 = sphi 0, %s158
    %s173 = sphi 0, %s159
    %s177 = sphi 0, %s177
    %s179 = sphi 0, %s177
    %s180 = sphi 0, %s179
    %s194 = sphi 0, %s180
    %s198 = sphi 0, %s198
    %s200 = sphi 0, %s198
    %s201 = sphi 0, %s200
    %s215 = sphi 0, %s201
    %s221 = sphi 0, %s223
    %s224 = sphi 0, %s221
    %s225 = sphi 0, %s224
    %s241 = sphi 0, %s225
  $region4: #{tpu_custom_call.1} parent=0 // loop_header_branch
    %20 = sbr.rel (%p18) target = $region8
  $region5: #{tpu_custom_call.1} parent=0 // loop_body
    %s22 = ssub.s32 %s17, 1
    %s23 = ssub.s32 %s17, 2
    %s24 = sadd.s32 %s17, 1
    %s25 = ssub.s32 %s17, %s24
    %p26 = scmp.eq.s32.totalorder %s25, 0
    %s28 = sadd.s32 %s27, 1
    %s29 = scalar_select %p26, %s27, %s28
    %p32 = pneg %p26
    %p33 = scmp.eq.s32.totalorder %s17, 4
    %p34 = por %p32, %p33
    %p35 = scmp.ne.s32.totalorder %s27, %s30
    %p36 = scmp.eq.s32.totalorder %s17, 0
    %p37 = por %p35, %p36
    %p38 = scmp.ne.s32.totalorder %s27, %s30
    %p39 = scmp.eq.s32.totalorder %s22, 4
    %p40 = por %p38, %p39
    %p41 = scmp.ne.s32.totalorder %s30, %s31
    %p42 = scmp.eq.s32.totalorder %s22, 0
    %p43 = por %p41, %p42
    %p44 = scmp.ne.s32.totalorder %s30, %s31
    %p45 = scmp.eq.s32.totalorder %s23, 4
    %p46 = por %p44, %p45
    %p48 = scmp.ne.s32.totalorder %s31, %s47
    %p49 = scmp.eq.s32.totalorder %s23, 0
    %p50 = por %p48, %p49
    %s52 = sadd.s32 %s51, 1
    %p55 = scmp.eq.s32.totalorder %s17, 4
    %p56 = scmp.ne.s32.totalorder %s51, %s53
    %p57 = scmp.eq.s32.totalorder %s17, 0
    %p58 = por %p56, %p57
    %p59 = scmp.ne.s32.totalorder %s51, %s53
    %p60 = scmp.eq.s32.totalorder %s22, 4
    %p61 = por %p59, %p60
    %p62 = scmp.ne.s32.totalorder %s53, %s54
    %p63 = scmp.eq.s32.totalorder %s22, 0
    %p64 = por %p62, %p63
    %p65 = scmp.ne.s32.totalorder %s53, %s54
    %p66 = scmp.eq.s32.totalorder %s23, 4
    %p67 = por %p65, %p66
    %p69 = scmp.ne.s32.totalorder %s54, %s68
    %p70 = scmp.eq.s32.totalorder %s23, 0
    %p71 = por %p69, %p70
    %s73 = sadd.s32 %s72, 1
    %p76 = scmp.eq.s32.totalorder %s17, 4
    %p77 = scmp.ne.s32.totalorder %s72, %s74
    %p78 = scmp.eq.s32.totalorder %s17, 0
    %p79 = por %p77, %p78
    %p80 = scmp.ne.s32.totalorder %s72, %s74
    %p81 = scmp.eq.s32.totalorder %s22, 4
    %p82 = por %p80, %p81
    %p83 = scmp.ne.s32.totalorder %s74, %s75
    %p84 = scmp.eq.s32.totalorder %s22, 0
    %p85 = por %p83, %p84
    %p86 = scmp.ne.s32.totalorder %s74, %s75
    %p87 = scmp.eq.s32.totalorder %s23, 4
    %p88 = por %p86, %p87
    %p90 = scmp.ne.s32.totalorder %s75, %s89
    %p91 = scmp.eq.s32.totalorder %s23, 0
    %p92 = por %p90, %p91
    %s94 = sadd.s32 %s93, 1
    %p97 = scmp.eq.s32.totalorder %s17, 4
    %p98 = scmp.ne.s32.totalorder %s93, %s95
    %p99 = scmp.eq.s32.totalorder %s17, 0
    %p100 = por %p98, %p99
    %p101 = scmp.ne.s32.totalorder %s93, %s95
    %p102 = scmp.eq.s32.totalorder %s22, 4
    %p103 = por %p101, %p102
    %p104 = scmp.ne.s32.totalorder %s95, %s96
    %p105 = scmp.eq.s32.totalorder %s22, 0
    %p106 = por %p104, %p105
    %p107 = scmp.ne.s32.totalorder %s95, %s96
    %p108 = scmp.eq.s32.totalorder %s23, 4
    %p109 = por %p107, %p108
    %p111 = scmp.ne.s32.totalorder %s96, %s110
    %p112 = scmp.eq.s32.totalorder %s23, 0
    %p113 = por %p111, %p112
    %s115 = sadd.s32 %s114, 1
    %p118 = scmp.eq.s32.totalorder %s17, 4
    %p119 = scmp.ne.s32.totalorder %s114, %s116
    %p120 = scmp.eq.s32.totalorder %s17, 0
    %p121 = por %p119, %p120
    %p122 = scmp.ne.s32.totalorder %s114, %s116
    %p123 = scmp.eq.s32.totalorder %s22, 4
    %p124 = por %p122, %p123
    %p125 = scmp.ne.s32.totalorder %s116, %s117
    %p126 = scmp.eq.s32.totalorder %s22, 0
    %p127 = por %p125, %p126
    %p128 = scmp.ne.s32.totalorder %s116, %s117
    %p129 = scmp.eq.s32.totalorder %s23, 4
    %p130 = por %p128, %p129
    %p132 = scmp.ne.s32.totalorder %s117, %s131
    %p133 = scmp.eq.s32.totalorder %s23, 0
    %p134 = por %p132, %p133
    %s136 = sadd.s32 %s135, 1
    %p139 = scmp.eq.s32.totalorder %s17, 4
    %p140 = scmp.ne.s32.totalorder %s135, %s137
    %p141 = scmp.eq.s32.totalorder %s17, 0
    %p142 = por %p140, %p141
    %p143 = scmp.ne.s32.totalorder %s135, %s137
    %p144 = scmp.eq.s32.totalorder %s22, 4
    %p145 = por %p143, %p144
    %p146 = scmp.ne.s32.totalorder %s137, %s138
    %p147 = scmp.eq.s32.totalorder %s22, 0
    %p148 = por %p146, %p147
    %p149 = scmp.ne.s32.totalorder %s137, %s138
    %p150 = scmp.eq.s32.totalorder %s23, 4
    %p151 = por %p149, %p150
    %p153 = scmp.ne.s32.totalorder %s138, %s152
    %p154 = scmp.eq.s32.totalorder %s23, 0
    %p155 = por %p153, %p154
    %s157 = sadd.s32 %s156, 1
    %p160 = scmp.eq.s32.totalorder %s17, 4
    %p161 = scmp.ne.s32.totalorder %s156, %s158
    %p162 = scmp.eq.s32.totalorder %s17, 0
    %p163 = por %p161, %p162
    %p164 = scmp.ne.s32.totalorder %s156, %s158
    %p165 = scmp.eq.s32.totalorder %s22, 4
    %p166 = por %p164, %p165
    %p167 = scmp.ne.s32.totalorder %s158, %s159
    %p168 = scmp.eq.s32.totalorder %s22, 0
    %p169 = por %p167, %p168
    %p170 = scmp.ne.s32.totalorder %s158, %s159
    %p171 = scmp.eq.s32.totalorder %s23, 4
    %p172 = por %p170, %p171
    %p174 = scmp.ne.s32.totalorder %s159, %s173
    %p175 = scmp.eq.s32.totalorder %s23, 0
    %p176 = por %p174, %p175
    %s178 = sadd.s32 %s177, 1
    %p181 = scmp.eq.s32.totalorder %s17, 4
    %p182 = scmp.ne.s32.totalorder %s177, %s179
    %p183 = scmp.eq.s32.totalorder %s17, 0
    %p184 = por %p182, %p183
    %p185 = scmp.ne.s32.totalorder %s177, %s179
    %p186 = scmp.eq.s32.totalorder %s22, 4
    %p187 = por %p185, %p186
    %p188 = scmp.ne.s32.totalorder %s179, %s180
    %p189 = scmp.eq.s32.totalorder %s22, 0
    %p190 = por %p188, %p189
    %p191 = scmp.ne.s32.totalorder %s179, %s180
    %p192 = scmp.eq.s32.totalorder %s23, 4
    %p193 = por %p191, %p192
    %p195 = scmp.ne.s32.totalorder %s180, %s194
    %p196 = scmp.eq.s32.totalorder %s23, 0
    %p197 = por %p195, %p196
    %s199 = sadd.s32 %s198, 1
    %p202 = scmp.eq.s32.totalorder %s17, 4
    %p203 = scmp.ne.s32.totalorder %s198, %s200
    %p204 = scmp.eq.s32.totalorder %s17, 0
    %p205 = por %p203, %p204
    %p206 = scmp.ne.s32.totalorder %s198, %s200
    %p207 = scmp.eq.s32.totalorder %s22, 4
    %p208 = por %p206, %p207
    %p209 = scmp.ne.s32.totalorder %s200, %s201
    %p210 = scmp.eq.s32.totalorder %s22, 0
    %p211 = por %p209, %p210
    %p212 = scmp.ne.s32.totalorder %s200, %s201
    %p213 = scmp.eq.s32.totalorder %s23, 4
    %p214 = por %p212, %p213
    %p216 = scmp.ne.s32.totalorder %s201, %s215
    %p217 = scmp.eq.s32.totalorder %s23, 0
    %p218 = por %p216, %p217
    %s219 = ssub.s32 %s17, %s24
    %p220 = scmp.eq.s32.totalorder %s219, 0
    %s222 = sadd.s32 %s221, 1
    %s223 = scalar_select %p220, %s221, %s222
    %p226 = pneg %p220
    %p227 = scmp.eq.s32.totalorder %s17, 4
    %p228 = por %p226, %p227
    %p229 = scmp.ne.s32.totalorder %s221, %s224
    %p230 = scmp.eq.s32.totalorder %s17, 0
    %p231 = por %p229, %p230
    %p232 = scmp.ne.s32.totalorder %s221, %s224
    %p233 = scmp.eq.s32.totalorder %s22, 4
    %p234 = por %p232, %p233
    %p235 = scmp.ne.s32.totalorder %s224, %s225
    %p236 = scmp.eq.s32.totalorder %s22, 0
    %p237 = por %p235, %p236
    %p238 = scmp.ne.s32.totalorder %s224, %s225
    %p239 = scmp.eq.s32.totalorder %s23, 4
    %p240 = por %p238, %p239
    %p242 = scmp.ne.s32.totalorder %s225, %s241
    %p243 = scmp.eq.s32.totalorder %s23, 0
    %p244 = por %p242, %p243
    %p245 = scmp.le.s32.totalorder 1, %s17
    %p246 = scmp.lt.s32.totalorder %s17, 6
    %p247 = pnand %p245, %p246
    %p248 = pneg %p247
    // Predicated region
    $region9: #{tpu_custom_call.1} parent=5 // pred_check
      _
    $region10: #{tpu_custom_call.1} parent=5 // pred_check_branch
      %250 = sbr.rel (%p247) target = $region12
    $region11: #{tpu_custom_call.1} parent=5 // pred_region
      %s251 = ssub.s32 %s17, 1
      // Predicated region
      $region13: #{tpu_custom_call.1} parent=11 // pred_check
        %p252 = pneg %p64
      $region14: #{tpu_custom_call.1} parent=11 // pred_check_branch
        %254 = sbr.rel (%p252) target = $region16
      $region15: #{tpu_custom_call.1} parent=11 // pred_region
        _
      $region16: #{tpu_custom_call.1} parent=11 // pred_fallthru
        _
      // Predicated region
      $region17: #{tpu_custom_call.1} parent=11 // pred_check
        %p255 = pneg %p85
      $region18: #{tpu_custom_call.1} parent=11 // pred_check_branch
        %257 = sbr.rel (%p255) target = $region20
      $region19: #{tpu_custom_call.1} parent=11 // pred_region
        _
      $region20: #{tpu_custom_call.1} parent=11 // pred_fallthru
        _
      // Predicated region
      $region21: #{tpu_custom_call.1} parent=11 // pred_check
        %p258 = pneg %p106
      $region22: #{tpu_custom_call.1} parent=11 // pred_check_branch
        %260 = sbr.rel (%p258) target = $region24
      $region23: #{tpu_custom_call.1} parent=11 // pred_region
        _
      $region24: #{tpu_custom_call.1} parent=11 // pred_fallthru
        _
      // Predicated region
      $region25: #{tpu_custom_call.1} parent=11 // pred_check
        %p261 = pneg %p127
      $region26: #{tpu_custom_call.1} parent=11 // pred_check_branch
        %263 = sbr.rel (%p261) target = $region28
      $region27: #{tpu_custom_call.1} parent=11 // pred_region
        _
      $region28: #{tpu_custom_call.1} parent=11 // pred_fallthru
        _
      // Predicated region
      $region29: #{tpu_custom_call.1} parent=11 // pred_check
        %p264 = pneg %p148
      $region30: #{tpu_custom_call.1} parent=11 // pred_check_branch
        %266 = sbr.rel (%p264) target = $region32
      $region31: #{tpu_custom_call.1} parent=11 // pred_region
        _
      $region32: #{tpu_custom_call.1} parent=11 // pred_fallthru
        _
      // Predicated region
      $region33: #{tpu_custom_call.1} parent=11 // pred_check
        %p267 = pneg %p169
      $region34: #{tpu_custom_call.1} parent=11 // pred_check_branch
        %269 = sbr.rel (%p267) target = $region36
      $region35: #{tpu_custom_call.1} parent=11 // pred_region
        _
      $region36: #{tpu_custom_call.1} parent=11 // pred_fallthru
        _
      // Predicated region
      $region37: #{tpu_custom_call.1} parent=11 // pred_check
        %p270 = pneg %p190
      $region38: #{tpu_custom_call.1} parent=11 // pred_check_branch
        %272 = sbr.rel (%p270) target = $region40
      $region39: #{tpu_custom_call.1} parent=11 // pred_region
        _
      $region40: #{tpu_custom_call.1} parent=11 // pred_fallthru
        _
      // Predicated region
      $region41: #{tpu_custom_call.1} parent=11 // pred_check
        %p273 = pneg %p211
      $region42: #{tpu_custom_call.1} parent=11 // pred_check_branch
        %275 = sbr.rel (%p273) target = $region44
      $region43: #{tpu_custom_call.1} parent=11 // pred_region
        _
      $region44: #{tpu_custom_call.1} parent=11 // pred_fallthru
        _
    $region12: #{tpu_custom_call.1} parent=5 // pred_fallthru
      _
    %p276 = scmp.lt.s32.totalorder %s17, 5
    // Predicated region
    $region45: #{tpu_custom_call.1} parent=5 // pred_check
      %p277 = pneg %p276
    $region46: #{tpu_custom_call.1} parent=5 // pred_check_branch
      %279 = sbr.rel (%p277) target = $region48
    $region47: #{tpu_custom_call.1} parent=5 // pred_region
      // Predicated region
      $region49: #{tpu_custom_call.1} parent=47 // pred_check
        %p280 = pneg %p37
      $region50: #{tpu_custom_call.1} parent=47 // pred_check_branch
        %282 = sbr.rel (%p280) target = $region52
      $region51: #{tpu_custom_call.1} parent=47 // pred_region
        %s283 = smul.u32 128, %s17
        %p284 = scmp.lt.s32.totalorder %s283, 639
        %s285 = scalar_select %p284, %s283, 639
        %s286 = smul.addr %s285, 8
        %s287 = scalar_lea.vmem %s0, %s286
        %s288 = smul.u32 128, %s17
      $region52: #{tpu_custom_call.1} parent=47 // pred_fallthru
        _
    $region48: #{tpu_custom_call.1} parent=5 // pred_fallthru
      _
    %p289 = scmp.le.s32.totalorder 1, %s17
    %p290 = scmp.lt.s32.totalorder %s17, 6
    %p291 = pnand %p289, %p290
    %p292 = pneg %p291
    // Predicated region
    $region53: #{tpu_custom_call.1} parent=5 // pred_check
      _
    $region54: #{tpu_custom_call.1} parent=5 // pred_check_branch
      %294 = sbr.rel (%p291) target = $region56
    $region55: #{tpu_custom_call.1} parent=5 // pred_region
      %s295 = ssub.s32 %s17, 1
      %s296 = smul.u32 128, %s22
      %p297 = scmp.lt.s32.totalorder %s296, 639
      %s298 = scalar_select %p297, %s296, 639
      %s299 = smul.addr %s298, 8
      %s300 = scalar_lea.vmem %s0, %s299
      %p301 = pneg %p43
      %p302 = pneg %p40
      %p303 = pneg %p64
      %p304 = pneg %p61
      %p305 = pneg %p85
      %p306 = pneg %p82
      %p307 = pneg %p106
      %p308 = pneg %p103
      %p309 = pneg %p127
      %p310 = pneg %p124
      %p311 = pneg %p148
      %p312 = pneg %p145
      %p313 = pneg %p169
      %p314 = pneg %p166
      %p315 = pneg %p190
      %p316 = pneg %p187
      %p317 = pneg %p211
      %p318 = pneg %p208
      %p319 = pneg %p237
      %p320 = pneg %p234
      %s321 = smul.u32 128, %s22
      %p322 = scmp.lt.s32.totalorder %s321, 639
      %s323 = scalar_select %p322, %s321, 639
      %s324 = smul.addr %s323, 8
      %s325 = scalar_lea.vmem %s9, %s324
      %s326 = smul.u32 128, %s22
      %p327 = scmp.lt.s32.totalorder %s326, 639
      %s328 = scalar_select %p327, %s326, 639
      %s329 = smul.addr %s328, 8
      %s330 = scalar_lea.vmem %s0, %s329
      %s331 = smul.u32 128, %s22
      %s332 = smul.u32 128, %s22
      %p333 = scmp.lt.s32.totalorder %s332, 639
      %s334 = scalar_select %p333, %s332, 639
      %s335 = smul.addr %s334, 8
      %s336 = scalar_lea.vmem %s9, %s335
      %s337 = smul.u32 128, %s22
      %v338 = vld [vmem:[%s330] sm:$0xff]
      %v339 = vld [vmem:[%s330 + $0x8] sm:$0xff]
      %v340 = vld [vmem:[%s330 + $0x10] sm:$0xff]
      %v341 = vld [vmem:[%s330 + $0x18] sm:$0xff]
      %v342 = vld [vmem:[%s330 + $0x20] sm:$0xff]
      %v343 = vld [vmem:[%s330 + $0x28] sm:$0xff]
      %v344 = vld [vmem:[%s330 + $0x30] sm:$0xff]
      %v345 = vld [vmem:[%s330 + $0x38] sm:$0xff]
      %v346 = vld [vmem:[%s330 + $0x40] sm:$0xff]
      %v347 = vld [vmem:[%s330 + $0x48] sm:$0xff]
      %v348 = vld [vmem:[%s330 + $0x50] sm:$0xff]
      %v349 = vld [vmem:[%s330 + $0x58] sm:$0xff]
      %v350 = vld [vmem:[%s330 + $0x60] sm:$0xff]
      %v351 = vld [vmem:[%s330 + $0x68] sm:$0xff]
      %v352 = vld [vmem:[%s330 + $0x70] sm:$0xff]
      %v353 = vld [vmem:[%s330 + $0x78] sm:$0xff]
      %v354 = vld [vmem:[%s330 + $0x80] sm:$0xff]
      %v355 = vld [vmem:[%s330 + $0x88] sm:$0xff]
      %v356 = vld [vmem:[%s330 + $0x90] sm:$0xff]
      %v357 = vld [vmem:[%s330 + $0x98] sm:$0xff]
      %v358 = vld [vmem:[%s330 + $0xa0] sm:$0xff]
      %v359 = vld [vmem:[%s330 + $0xa8] sm:$0xff]
      %v360 = vld [vmem:[%s330 + $0xb0] sm:$0xff]
      %v361 = vld [vmem:[%s330 + $0xb8] sm:$0xff]
      %v362 = vld [vmem:[%s330 + $0xc0] sm:$0xff]
      %v363 = vld [vmem:[%s330 + $0xc8] sm:$0xff]
      %v364 = vld [vmem:[%s330 + $0xd0] sm:$0xff]
      %v365 = vld [vmem:[%s330 + $0xd8] sm:$0xff]
      %v366 = vld [vmem:[%s330 + $0xe0] sm:$0xff]
      %v367 = vld [vmem:[%s330 + $0xe8] sm:$0xff]
      %v368 = vld [vmem:[%s330 + $0xf0] sm:$0xff]
      %v369 = vld [vmem:[%s330 + $0xf8] sm:$0xff]
      %v370 = vld [vmem:[%s330 + $0x100] sm:$0xff]
      %v371 = vld [vmem:[%s330 + $0x108] sm:$0xff]
      %v372 = vld [vmem:[%s330 + $0x110] sm:$0xff]
      %v373 = vld [vmem:[%s330 + $0x118] sm:$0xff]
      %v374 = vld [vmem:[%s330 + $0x120] sm:$0xff]
      %v375 = vld [vmem:[%s330 + $0x128] sm:$0xff]
      %v376 = vld [vmem:[%s330 + $0x130] sm:$0xff]
      %v377 = vld [vmem:[%s330 + $0x138] sm:$0xff]
      %v378 = vld [vmem:[%s330 + $0x140] sm:$0xff]
      %v379 = vld [vmem:[%s330 + $0x148] sm:$0xff]
      %v380 = vld [vmem:[%s330 + $0x150] sm:$0xff]
      %v381 = vld [vmem:[%s330 + $0x158] sm:$0xff]
      %v382 = vld [vmem:[%s330 + $0x160] sm:$0xff]
      %v383 = vld [vmem:[%s330 + $0x168] sm:$0xff]
      %v384 = vld [vmem:[%s330 + $0x170] sm:$0xff]
      %v385 = vld [vmem:[%s330 + $0x178] sm:$0xff]
      %v386 = vld [vmem:[%s330 + $0x180] sm:$0xff]
      %v387 = vld [vmem:[%s330 + $0x188] sm:$0xff]
      %v388 = vld [vmem:[%s330 + $0x190] sm:$0xff]
      %v389 = vld [vmem:[%s330 + $0x198] sm:$0xff]
      %v390 = vld [vmem:[%s330 + $0x1a0] sm:$0xff]
      %v391 = vld [vmem:[%s330 + $0x1a8] sm:$0xff]
      %v392 = vld [vmem:[%s330 + $0x1b0] sm:$0xff]
      %v393 = vld [vmem:[%s330 + $0x1b8] sm:$0xff]
      %v394 = vld [vmem:[%s330 + $0x1c0] sm:$0xff]
      %v395 = vld [vmem:[%s330 + $0x1c8] sm:$0xff]
      %v396 = vld [vmem:[%s330 + $0x1d0] sm:$0xff]
      %v397 = vld [vmem:[%s330 + $0x1d8] sm:$0xff]
      %v398 = vld [vmem:[%s330 + $0x1e0] sm:$0xff]
      %v399 = vld [vmem:[%s330 + $0x1e8] sm:$0xff]
      %v400 = vld [vmem:[%s330 + $0x1f0] sm:$0xff]
      %v401 = vld [vmem:[%s330 + $0x1f8] sm:$0xff]
      %v402 = vld [vmem:[%s330 + $0x200] sm:$0xff]
      %v403 = vld [vmem:[%s330 + $0x208] sm:$0xff]
      %v404 = vld [vmem:[%s330 + $0x210] sm:$0xff]
      %v405 = vld [vmem:[%s330 + $0x218] sm:$0xff]
      %v406 = vld [vmem:[%s330 + $0x220] sm:$0xff]
      %v407 = vld [vmem:[%s330 + $0x228] sm:$0xff]
      %v408 = vld [vmem:[%s330 + $0x230] sm:$0xff]
      %v409 = vld [vmem:[%s330 + $0x238] sm:$0xff]
      %v410 = vld [vmem:[%s330 + $0x240] sm:$0xff]
      %v411 = vld [vmem:[%s330 + $0x248] sm:$0xff]
      %v412 = vld [vmem:[%s330 + $0x250] sm:$0xff]
      %v413 = vld [vmem:[%s330 + $0x258] sm:$0xff]
      %v414 = vld [vmem:[%s330 + $0x260] sm:$0xff]
      %v415 = vld [vmem:[%s330 + $0x268] sm:$0xff]
      %v416 = vld [vmem:[%s330 + $0x270] sm:$0xff]
      %v417 = vld [vmem:[%s330 + $0x278] sm:$0xff]
      %v418 = vld [vmem:[%s330 + $0x280] sm:$0xff]
      %v419 = vld [vmem:[%s330 + $0x288] sm:$0xff]
      %v420 = vld [vmem:[%s330 + $0x290] sm:$0xff]
      %v421 = vld [vmem:[%s330 + $0x298] sm:$0xff]
      %v422 = vld [vmem:[%s330 + $0x2a0] sm:$0xff]
      %v423 = vld [vmem:[%s330 + $0x2a8] sm:$0xff]
      %v424 = vld [vmem:[%s330 + $0x2b0] sm:$0xff]
      %v425 = vld [vmem:[%s330 + $0x2b8] sm:$0xff]
      %v426 = vld [vmem:[%s330 + $0x2c0] sm:$0xff]
      %v427 = vld [vmem:[%s330 + $0x2c8] sm:$0xff]
      %v428 = vld [vmem:[%s330 + $0x2d0] sm:$0xff]
      %v429 = vld [vmem:[%s330 + $0x2d8] sm:$0xff]
      %v430 = vld [vmem:[%s330 + $0x2e0] sm:$0xff]
      %v431 = vld [vmem:[%s330 + $0x2e8] sm:$0xff]
      %v432 = vld [vmem:[%s330 + $0x2f0] sm:$0xff]
      %v433 = vld [vmem:[%s330 + $0x2f8] sm:$0xff]
      %v434 = vld [vmem:[%s330 + $0x300] sm:$0xff]
      %v435 = vld [vmem:[%s330 + $0x308] sm:$0xff]
      %v436 = vld [vmem:[%s330 + $0x310] sm:$0xff]
      %v437 = vld [vmem:[%s330 + $0x318] sm:$0xff]
      %v438 = vld [vmem:[%s330 + $0x320] sm:$0xff]
      %v439 = vld [vmem:[%s330 + $0x328] sm:$0xff]
      %v440 = vld [vmem:[%s330 + $0x330] sm:$0xff]
      %v441 = vld [vmem:[%s330 + $0x338] sm:$0xff]
      %v442 = vld [vmem:[%s330 + $0x340] sm:$0xff]
      %v443 = vld [vmem:[%s330 + $0x348] sm:$0xff]
      %v444 = vld [vmem:[%s330 + $0x350] sm:$0xff]
      %v445 = vld [vmem:[%s330 + $0x358] sm:$0xff]
      %v446 = vld [vmem:[%s330 + $0x360] sm:$0xff]
      %v447 = vld [vmem:[%s330 + $0x368] sm:$0xff]
      %v448 = vld [vmem:[%s330 + $0x370] sm:$0xff]
      %v449 = vld [vmem:[%s330 + $0x378] sm:$0xff]
      %v450 = vld [vmem:[%s330 + $0x380] sm:$0xff]
      %v451 = vld [vmem:[%s330 + $0x388] sm:$0xff]
      %v452 = vld [vmem:[%s330 + $0x390] sm:$0xff]
      %v453 = vld [vmem:[%s330 + $0x398] sm:$0xff]
      %v454 = vld [vmem:[%s330 + $0x3a0] sm:$0xff]
      %v455 = vld [vmem:[%s330 + $0x3a8] sm:$0xff]
      %v456 = vld [vmem:[%s330 + $0x3b0] sm:$0xff]
      %v457 = vld [vmem:[%s330 + $0x3b8] sm:$0xff]
      %v458 = vld [vmem:[%s330 + $0x3c0] sm:$0xff]
      %v459 = vld [vmem:[%s330 + $0x3c8] sm:$0xff]
      %v460 = vld [vmem:[%s330 + $0x3d0] sm:$0xff]
      %v461 = vld [vmem:[%s330 + $0x3d8] sm:$0xff]
      %v462 = vld [vmem:[%s330 + $0x3e0] sm:$0xff]
      %v463 = vld [vmem:[%s330 + $0x3e8] sm:$0xff]
      %v464 = vld [vmem:[%s330 + $0x3f0] sm:$0xff]
      %v465 = vld [vmem:[%s330 + $0x3f8] sm:$0xff]
      %v466 = vld [vmem:[%s1] sm:$0x1]
      %468 = vset.pattern.permute.xlu0 0
      %469 = vperm.xlu0 %468, %v338
      %v470 = vpop.permute.xlu0 %469
      %473 = vset.pattern.permute.xlu0 0
      %474 = vperm.xlu0 %473, %v339
      %v475 = vpop.permute.xlu0 %474
      %478 = vset.pattern.permute.xlu0 0
      %479 = vperm.xlu0 %478, %v340
      %v480 = vpop.permute.xlu0 %479
      %483 = vset.pattern.permute.xlu0 0
      %484 = vperm.xlu0 %483, %v341
      %v485 = vpop.permute.xlu0 %484
      %488 = vset.pattern.permute.xlu0 0
      %489 = vperm.xlu0 %488, %v342
      %v490 = vpop.permute.xlu0 %489
      %493 = vset.pattern.permute.xlu0 0
      %494 = vperm.xlu0 %493, %v343
      %v495 = vpop.permute.xlu0 %494
      %498 = vset.pattern.permute.xlu0 0
      %499 = vperm.xlu0 %498, %v344
      %v500 = vpop.permute.xlu0 %499
      %503 = vset.pattern.permute.xlu0 0
      %504 = vperm.xlu0 %503, %v345
      %v505 = vpop.permute.xlu0 %504
      %508 = vset.pattern.permute.xlu0 0
      %509 = vperm.xlu0 %508, %v346
      %v510 = vpop.permute.xlu0 %509
      %513 = vset.pattern.permute.xlu0 0
      %514 = vperm.xlu0 %513, %v347
      %v515 = vpop.permute.xlu0 %514
      %518 = vset.pattern.permute.xlu0 0
      %519 = vperm.xlu0 %518, %v348
      %v520 = vpop.permute.xlu0 %519
      %523 = vset.pattern.permute.xlu0 0
      %524 = vperm.xlu0 %523, %v349
      %v525 = vpop.permute.xlu0 %524
      %528 = vset.pattern.permute.xlu0 0
      %529 = vperm.xlu0 %528, %v350
      %v530 = vpop.permute.xlu0 %529
      %533 = vset.pattern.permute.xlu0 0
      %534 = vperm.xlu0 %533, %v351
      %v535 = vpop.permute.xlu0 %534
      %538 = vset.pattern.permute.xlu0 0
      %539 = vperm.xlu0 %538, %v352
      %v540 = vpop.permute.xlu0 %539
      %543 = vset.pattern.permute.xlu0 0
      %544 = vperm.xlu0 %543, %v353
      %v545 = vpop.permute.xlu0 %544
      %548 = vset.pattern.permute.xlu0 0
      %549 = vperm.xlu0 %548, %v354
      %v550 = vpop.permute.xlu0 %549
      %553 = vset.pattern.permute.xlu0 0
      %554 = vperm.xlu0 %553, %v355
      %v555 = vpop.permute.xlu0 %554
      %558 = vset.pattern.permute.xlu0 0
      %559 = vperm.xlu0 %558, %v356
      %v560 = vpop.permute.xlu0 %559
      %563 = vset.pattern.permute.xlu0 0
      %564 = vperm.xlu0 %563, %v357
      %v565 = vpop.permute.xlu0 %564
      %568 = vset.pattern.permute.xlu0 0
      %569 = vperm.xlu0 %568, %v358
      %v570 = vpop.permute.xlu0 %569
      %573 = vset.pattern.permute.xlu0 0
      %574 = vperm.xlu0 %573, %v359
      %v575 = vpop.permute.xlu0 %574
      %578 = vset.pattern.permute.xlu0 0
      %579 = vperm.xlu0 %578, %v360
      %v580 = vpop.permute.xlu0 %579
      %583 = vset.pattern.permute.xlu0 0
      %584 = vperm.xlu0 %583, %v361
      %v585 = vpop.permute.xlu0 %584
      %588 = vset.pattern.permute.xlu0 0
      %589 = vperm.xlu0 %588, %v362
      %v590 = vpop.permute.xlu0 %589
      %593 = vset.pattern.permute.xlu0 0
      %594 = vperm.xlu0 %593, %v363
      %v595 = vpop.permute.xlu0 %594
      %598 = vset.pattern.permute.xlu0 0
      %599 = vperm.xlu0 %598, %v364
      %v600 = vpop.permute.xlu0 %599
      %603 = vset.pattern.permute.xlu0 0
      %604 = vperm.xlu0 %603, %v365
      %v605 = vpop.permute.xlu0 %604
      %608 = vset.pattern.permute.xlu0 0
      %609 = vperm.xlu0 %608, %v366
      %v610 = vpop.permute.xlu0 %609
      %613 = vset.pattern.permute.xlu0 0
      %614 = vperm.xlu0 %613, %v367
      %v615 = vpop.permute.xlu0 %614
      %618 = vset.pattern.permute.xlu0 0
      %619 = vperm.xlu0 %618, %v368
      %v620 = vpop.permute.xlu0 %619
      %623 = vset.pattern.permute.xlu0 0
      %624 = vperm.xlu0 %623, %v369
      %v625 = vpop.permute.xlu0 %624
      %628 = vset.pattern.permute.xlu0 0
      %629 = vperm.xlu0 %628, %v370
      %v630 = vpop.permute.xlu0 %629
      %633 = vset.pattern.permute.xlu0 0
      %634 = vperm.xlu0 %633, %v371
      %v635 = vpop.permute.xlu0 %634
      %638 = vset.pattern.permute.xlu0 0
      %639 = vperm.xlu0 %638, %v372
      %v640 = vpop.permute.xlu0 %639
      %643 = vset.pattern.permute.xlu0 0
      %644 = vperm.xlu0 %643, %v373
      %v645 = vpop.permute.xlu0 %644
      %648 = vset.pattern.permute.xlu0 0
      %649 = vperm.xlu0 %648, %v374
      %v650 = vpop.permute.xlu0 %649
      %653 = vset.pattern.permute.xlu0 0
      %654 = vperm.xlu0 %653, %v375
      %v655 = vpop.permute.xlu0 %654
      %658 = vset.pattern.permute.xlu0 0
      %659 = vperm.xlu0 %658, %v376
      %v660 = vpop.permute.xlu0 %659
      %663 = vset.pattern.permute.xlu0 0
      %664 = vperm.xlu0 %663, %v377
      %v665 = vpop.permute.xlu0 %664
      %668 = vset.pattern.permute.xlu0 0
      %669 = vperm.xlu0 %668, %v378
      %v670 = vpop.permute.xlu0 %669
      %673 = vset.pattern.permute.xlu0 0
      %674 = vperm.xlu0 %673, %v379
      %v675 = vpop.permute.xlu0 %674
      %678 = vset.pattern.permute.xlu0 0
      %679 = vperm.xlu0 %678, %v380
      %v680 = vpop.permute.xlu0 %679
      %683 = vset.pattern.permute.xlu0 0
      %684 = vperm.xlu0 %683, %v381
      %v685 = vpop.permute.xlu0 %684
      %688 = vset.pattern.permute.xlu0 0
      %689 = vperm.xlu0 %688, %v382
      %v690 = vpop.permute.xlu0 %689
      %693 = vset.pattern.permute.xlu0 0
      %694 = vperm.xlu0 %693, %v383
      %v695 = vpop.permute.xlu0 %694
      %698 = vset.pattern.permute.xlu0 0
      %699 = vperm.xlu0 %698, %v384
      %v700 = vpop.permute.xlu0 %699
      %703 = vset.pattern.permute.xlu0 0
      %704 = vperm.xlu0 %703, %v385
      %v705 = vpop.permute.xlu0 %704
      %708 = vset.pattern.permute.xlu0 0
      %709 = vperm.xlu0 %708, %v386
      %v710 = vpop.permute.xlu0 %709
      %713 = vset.pattern.permute.xlu0 0
      %714 = vperm.xlu0 %713, %v387
      %v715 = vpop.permute.xlu0 %714
      %718 = vset.pattern.permute.xlu0 0
      %719 = vperm.xlu0 %718, %v388
      %v720 = vpop.permute.xlu0 %719
      %723 = vset.pattern.permute.xlu0 0
      %724 = vperm.xlu0 %723, %v389
      %v725 = vpop.permute.xlu0 %724
      %728 = vset.pattern.permute.xlu0 0
      %729 = vperm.xlu0 %728, %v390
      %v730 = vpop.permute.xlu0 %729
      %733 = vset.pattern.permute.xlu0 0
      %734 = vperm.xlu0 %733, %v391
      %v735 = vpop.permute.xlu0 %734
      %738 = vset.pattern.permute.xlu0 0
      %739 = vperm.xlu0 %738, %v392
      %v740 = vpop.permute.xlu0 %739
      %743 = vset.pattern.permute.xlu0 0
      %744 = vperm.xlu0 %743, %v393
      %v745 = vpop.permute.xlu0 %744
      %748 = vset.pattern.permute.xlu0 0
      %749 = vperm.xlu0 %748, %v394
      %v750 = vpop.permute.xlu0 %749
      %753 = vset.pattern.permute.xlu0 0
      %754 = vperm.xlu0 %753, %v395
      %v755 = vpop.permute.xlu0 %754
      %758 = vset.pattern.permute.xlu0 0
      %759 = vperm.xlu0 %758, %v396
      %v760 = vpop.permute.xlu0 %759
      %763 = vset.pattern.permute.xlu0 0
      %764 = vperm.xlu0 %763, %v397
      %v765 = vpop.permute.xlu0 %764
      %768 = vset.pattern.permute.xlu0 0
      %769 = vperm.xlu0 %768, %v398
      %v770 = vpop.permute.xlu0 %769
      %773 = vset.pattern.permute.xlu0 0
      %774 = vperm.xlu0 %773, %v399
      %v775 = vpop.permute.xlu0 %774
      %778 = vset.pattern.permute.xlu0 0
      %779 = vperm.xlu0 %778, %v400
      %v780 = vpop.permute.xlu0 %779
      %783 = vset.pattern.permute.xlu0 0
      %784 = vperm.xlu0 %783, %v401
      %v785 = vpop.permute.xlu0 %784
      %788 = vset.pattern.permute.xlu0 0
      %789 = vperm.xlu0 %788, %v402
      %v790 = vpop.permute.xlu0 %789
      %793 = vset.pattern.permute.xlu0 0
      %794 = vperm.xlu0 %793, %v403
      %v795 = vpop.permute.xlu0 %794
      %798 = vset.pattern.permute.xlu0 0
      %799 = vperm.xlu0 %798, %v404
      %v800 = vpop.permute.xlu0 %799
      %803 = vset.pattern.permute.xlu0 0
      %804 = vperm.xlu0 %803, %v405
      %v805 = vpop.permute.xlu0 %804
      %808 = vset.pattern.permute.xlu0 0
      %809 = vperm.xlu0 %808, %v406
      %v810 = vpop.permute.xlu0 %809
      %813 = vset.pattern.permute.xlu0 0
      %814 = vperm.xlu0 %813, %v407
      %v815 = vpop.permute.xlu0 %814
      %818 = vset.pattern.permute.xlu0 0
      %819 = vperm.xlu0 %818, %v408
      %v820 = vpop.permute.xlu0 %819
      %823 = vset.pattern.permute.xlu0 0
      %824 = vperm.xlu0 %823, %v409
      %v825 = vpop.permute.xlu0 %824
      %828 = vset.pattern.permute.xlu0 0
      %829 = vperm.xlu0 %828, %v410
      %v830 = vpop.permute.xlu0 %829
      %833 = vset.pattern.permute.xlu0 0
      %834 = vperm.xlu0 %833, %v411
      %v835 = vpop.permute.xlu0 %834
      %838 = vset.pattern.permute.xlu0 0
      %839 = vperm.xlu0 %838, %v412
      %v840 = vpop.permute.xlu0 %839
      %843 = vset.pattern.permute.xlu0 0
      %844 = vperm.xlu0 %843, %v413
      %v845 = vpop.permute.xlu0 %844
      %848 = vset.pattern.permute.xlu0 0
      %849 = vperm.xlu0 %848, %v414
      %v850 = vpop.permute.xlu0 %849
      %853 = vset.pattern.permute.xlu0 0
      %854 = vperm.xlu0 %853, %v415
      %v855 = vpop.permute.xlu0 %854
      %858 = vset.pattern.permute.xlu0 0
      %859 = vperm.xlu0 %858, %v416
      %v860 = vpop.permute.xlu0 %859
      %863 = vset.pattern.permute.xlu0 0
      %864 = vperm.xlu0 %863, %v417
      %v865 = vpop.permute.xlu0 %864
      %868 = vset.pattern.permute.xlu0 0
      %869 = vperm.xlu0 %868, %v418
      %v870 = vpop.permute.xlu0 %869
      %873 = vset.pattern.permute.xlu0 0
      %874 = vperm.xlu0 %873, %v419
      %v875 = vpop.permute.xlu0 %874
      %878 = vset.pattern.permute.xlu0 0
      %879 = vperm.xlu0 %878, %v420
      %v880 = vpop.permute.xlu0 %879
      %883 = vset.pattern.permute.xlu0 0
      %884 = vperm.xlu0 %883, %v421
      %v885 = vpop.permute.xlu0 %884
      %888 = vset.pattern.permute.xlu0 0
      %889 = vperm.xlu0 %888, %v422
      %v890 = vpop.permute.xlu0 %889
      %893 = vset.pattern.permute.xlu0 0
      %894 = vperm.xlu0 %893, %v423
      %v895 = vpop.permute.xlu0 %894
      %898 = vset.pattern.permute.xlu0 0
      %899 = vperm.xlu0 %898, %v424
      %v900 = vpop.permute.xlu0 %899
      %903 = vset.pattern.permute.xlu0 0
      %904 = vperm.xlu0 %903, %v425
      %v905 = vpop.permute.xlu0 %904
      %908 = vset.pattern.permute.xlu0 0
      %909 = vperm.xlu0 %908, %v426
      %v910 = vpop.permute.xlu0 %909
      %913 = vset.pattern.permute.xlu0 0
      %914 = vperm.xlu0 %913, %v427
      %v915 = vpop.permute.xlu0 %914
      %918 = vset.pattern.permute.xlu0 0
      %919 = vperm.xlu0 %918, %v428
      %v920 = vpop.permute.xlu0 %919
      %923 = vset.pattern.permute.xlu0 0
      %924 = vperm.xlu0 %923, %v429
      %v925 = vpop.permute.xlu0 %924
      %928 = vset.pattern.permute.xlu0 0
      %929 = vperm.xlu0 %928, %v430
      %v930 = vpop.permute.xlu0 %929
      %933 = vset.pattern.permute.xlu0 0
      %934 = vperm.xlu0 %933, %v431
      %v935 = vpop.permute.xlu0 %934
      %938 = vset.pattern.permute.xlu0 0
      %939 = vperm.xlu0 %938, %v432
      %v940 = vpop.permute.xlu0 %939
      %943 = vset.pattern.permute.xlu0 0
      %944 = vperm.xlu0 %943, %v433
      %v945 = vpop.permute.xlu0 %944
      %948 = vset.pattern.permute.xlu0 0
      %949 = vperm.xlu0 %948, %v434
      %v950 = vpop.permute.xlu0 %949
      %953 = vset.pattern.permute.xlu0 0
      %954 = vperm.xlu0 %953, %v435
      %v955 = vpop.permute.xlu0 %954
      %958 = vset.pattern.permute.xlu0 0
      %959 = vperm.xlu0 %958, %v436
      %v960 = vpop.permute.xlu0 %959
      %963 = vset.pattern.permute.xlu0 0
      %964 = vperm.xlu0 %963, %v437
      %v965 = vpop.permute.xlu0 %964
      %968 = vset.pattern.permute.xlu0 0
      %969 = vperm.xlu0 %968, %v438
      %v970 = vpop.permute.xlu0 %969
      %973 = vset.pattern.permute.xlu0 0
      %974 = vperm.xlu0 %973, %v439
      %v975 = vpop.permute.xlu0 %974
      %978 = vset.pattern.permute.xlu0 0
      %979 = vperm.xlu0 %978, %v440
      %v980 = vpop.permute.xlu0 %979
      %983 = vset.pattern.permute.xlu0 0
      %984 = vperm.xlu0 %983, %v441
      %v985 = vpop.permute.xlu0 %984
      %988 = vset.pattern.permute.xlu0 0
      %989 = vperm.xlu0 %988, %v442
      %v990 = vpop.permute.xlu0 %989
      %993 = vset.pattern.permute.xlu0 0
      %994 = vperm.xlu0 %993, %v443
      %v995 = vpop.permute.xlu0 %994
      %998 = vset.pattern.permute.xlu0 0
      %999 = vperm.xlu0 %998, %v444
      %v1000 = vpop.permute.xlu0 %999
      %1003 = vset.pattern.permute.xlu0 0
      %1004 = vperm.xlu0 %1003, %v445
      %v1005 = vpop.permute.xlu0 %1004
      %1008 = vset.pattern.permute.xlu0 0
      %1009 = vperm.xlu0 %1008, %v446
      %v1010 = vpop.permute.xlu0 %1009
      %1013 = vset.pattern.permute.xlu0 0
      %1014 = vperm.xlu0 %1013, %v447
      %v1015 = vpop.permute.xlu0 %1014
      %1018 = vset.pattern.permute.xlu0 0
      %1019 = vperm.xlu0 %1018, %v448
      %v1020 = vpop.permute.xlu0 %1019
      %1023 = vset.pattern.permute.xlu0 0
      %1024 = vperm.xlu0 %1023, %v449
      %v1025 = vpop.permute.xlu0 %1024
      %1028 = vset.pattern.permute.xlu0 0
      %1029 = vperm.xlu0 %1028, %v450
      %v1030 = vpop.permute.xlu0 %1029
      %1033 = vset.pattern.permute.xlu0 0
      %1034 = vperm.xlu0 %1033, %v451
      %v1035 = vpop.permute.xlu0 %1034
      %1038 = vset.pattern.permute.xlu0 0
      %1039 = vperm.xlu0 %1038, %v452
      %v1040 = vpop.permute.xlu0 %1039
      %1043 = vset.pattern.permute.xlu0 0
      %1044 = vperm.xlu0 %1043, %v453
      %v1045 = vpop.permute.xlu0 %1044
      %1048 = vset.pattern.permute.xlu0 0
      %1049 = vperm.xlu0 %1048, %v454
      %v1050 = vpop.permute.xlu0 %1049
      %1053 = vset.pattern.permute.xlu0 0
      %1054 = vperm.xlu0 %1053, %v455
      %v1055 = vpop.permute.xlu0 %1054
      %1058 = vset.pattern.permute.xlu0 0
      %1059 = vperm.xlu0 %1058, %v456
      %v1060 = vpop.permute.xlu0 %1059
      %1063 = vset.pattern.permute.xlu0 0
      %1064 = vperm.xlu0 %1063, %v457
      %v1065 = vpop.permute.xlu0 %1064
      %1068 = vset.pattern.permute.xlu0 0
      %1069 = vperm.xlu0 %1068, %v458
      %v1070 = vpop.permute.xlu0 %1069
      %1073 = vset.pattern.permute.xlu0 0
      %1074 = vperm.xlu0 %1073, %v459
      %v1075 = vpop.permute.xlu0 %1074
      %1078 = vset.pattern.permute.xlu0 0
      %1079 = vperm.xlu0 %1078, %v460
      %v1080 = vpop.permute.xlu0 %1079
      %1083 = vset.pattern.permute.xlu0 0
      %1084 = vperm.xlu0 %1083, %v461
      %v1085 = vpop.permute.xlu0 %1084
      %1088 = vset.pattern.permute.xlu0 0
      %1089 = vperm.xlu0 %1088, %v462
      %v1090 = vpop.permute.xlu0 %1089
      %1093 = vset.pattern.permute.xlu0 0
      %1094 = vperm.xlu0 %1093, %v463
      %v1095 = vpop.permute.xlu0 %1094
      %1098 = vset.pattern.permute.xlu0 0
      %1099 = vperm.xlu0 %1098, %v464
      %v1100 = vpop.permute.xlu0 %1099
      %1103 = vset.pattern.permute.xlu0 0
      %1104 = vperm.xlu0 %1103, %v465
      %v1105 = vpop.permute.xlu0 %1104
      %v1108 = vperm.slane %v466, 0
      %v1110 = vmul.f32 %v470, %v1108
      %v1111 = vmul.f32 %v475, %v1108
      %v1112 = vmul.f32 %v480, %v1108
      %v1113 = vmul.f32 %v485, %v1108
      %v1114 = vmul.f32 %v490, %v1108
      %v1115 = vmul.f32 %v495, %v1108
      %v1116 = vmul.f32 %v500, %v1108
      %v1117 = vmul.f32 %v505, %v1108
      %v1118 = vmul.f32 %v510, %v1108
      %v1119 = vmul.f32 %v515, %v1108
      %v1120 = vmul.f32 %v520, %v1108
      %v1121 = vmul.f32 %v525, %v1108
      %v1122 = vmul.f32 %v530, %v1108
      %v1123 = vmul.f32 %v535, %v1108
      %v1124 = vmul.f32 %v540, %v1108
      %v1125 = vmul.f32 %v545, %v1108
      %v1126 = vmul.f32 %v550, %v1108
      %v1127 = vmul.f32 %v555, %v1108
      %v1128 = vmul.f32 %v560, %v1108
      %v1129 = vmul.f32 %v565, %v1108
      %v1130 = vmul.f32 %v570, %v1108
      %v1131 = vmul.f32 %v575, %v1108
      %v1132 = vmul.f32 %v580, %v1108
      %v1133 = vmul.f32 %v585, %v1108
      %v1134 = vmul.f32 %v590, %v1108
      %v1135 = vmul.f32 %v595, %v1108
      %v1136 = vmul.f32 %v600, %v1108
      %v1137 = vmul.f32 %v605, %v1108
      %v1138 = vmul.f32 %v610, %v1108
      %v1139 = vmul.f32 %v615, %v1108
      %v1140 = vmul.f32 %v620, %v1108
      %v1141 = vmul.f32 %v625, %v1108
      %v1142 = vmul.f32 %v630, %v1108
      %v1143 = vmul.f32 %v635, %v1108
      %v1144 = vmul.f32 %v640, %v1108
      %v1145 = vmul.f32 %v645, %v1108
      %v1146 = vmul.f32 %v650, %v1108
      %v1147 = vmul.f32 %v655, %v1108
      %v1148 = vmul.f32 %v660, %v1108
      %v1149 = vmul.f32 %v665, %v1108
      %v1150 = vmul.f32 %v670, %v1108
      %v1151 = vmul.f32 %v675, %v1108
      %v1152 = vmul.f32 %v680, %v1108
      %v1153 = vmul.f32 %v685, %v1108
      %v1154 = vmul.f32 %v690, %v1108
      %v1155 = vmul.f32 %v695, %v1108
      %v1156 = vmul.f32 %v700, %v1108
      %v1157 = vmul.f32 %v705, %v1108
      %v1158 = vmul.f32 %v710, %v1108
      %v1159 = vmul.f32 %v715, %v1108
      %v1160 = vmul.f32 %v720, %v1108
      %v1161 = vmul.f32 %v725, %v1108
      %v1162 = vmul.f32 %v730, %v1108
      %v1163 = vmul.f32 %v735, %v1108
      %v1164 = vmul.f32 %v740, %v1108
      %v1165 = vmul.f32 %v745, %v1108
      %v1166 = vmul.f32 %v750, %v1108
      %v1167 = vmul.f32 %v755, %v1108
      %v1168 = vmul.f32 %v760, %v1108
      %v1169 = vmul.f32 %v765, %v1108
      %v1170 = vmul.f32 %v770, %v1108
      %v1171 = vmul.f32 %v775, %v1108
      %v1172 = vmul.f32 %v780, %v1108
      %v1173 = vmul.f32 %v785, %v1108
      %v1174 = vmul.f32 %v790, %v1108
      %v1175 = vmul.f32 %v795, %v1108
      %v1176 = vmul.f32 %v800, %v1108
      %v1177 = vmul.f32 %v805, %v1108
      %v1178 = vmul.f32 %v810, %v1108
      %v1179 = vmul.f32 %v815, %v1108
      %v1180 = vmul.f32 %v820, %v1108
      %v1181 = vmul.f32 %v825, %v1108
      %v1182 = vmul.f32 %v830, %v1108
      %v1183 = vmul.f32 %v835, %v1108
      %v1184 = vmul.f32 %v840, %v1108
      %v1185 = vmul.f32 %v845, %v1108
      %v1186 = vmul.f32 %v850, %v1108
      %v1187 = vmul.f32 %v855, %v1108
      %v1188 = vmul.f32 %v860, %v1108
      %v1189 = vmul.f32 %v865, %v1108
      %v1190 = vmul.f32 %v870, %v1108
      %v1191 = vmul.f32 %v875, %v1108
      %v1192 = vmul.f32 %v880, %v1108
      %v1193 = vmul.f32 %v885, %v1108
      %v1194 = vmul.f32 %v890, %v1108
      %v1195 = vmul.f32 %v895, %v1108
      %v1196 = vmul.f32 %v900, %v1108
      %v1197 = vmul.f32 %v905, %v1108
      %v1198 = vmul.f32 %v910, %v1108
      %v1199 = vmul.f32 %v915, %v1108
      %v1200 = vmul.f32 %v920, %v1108
      %v1201 = vmul.f32 %v925, %v1108
      %v1202 = vmul.f32 %v930, %v1108
      %v1203 = vmul.f32 %v935, %v1108
      %v1204 = vmul.f32 %v940, %v1108
      %v1205 = vmul.f32 %v945, %v1108
      %v1206 = vmul.f32 %v950, %v1108
      %v1207 = vmul.f32 %v955, %v1108
      %v1208 = vmul.f32 %v960, %v1108
      %v1209 = vmul.f32 %v965, %v1108
      %v1210 = vmul.f32 %v970, %v1108
      %v1211 = vmul.f32 %v975, %v1108
      %v1212 = vmul.f32 %v980, %v1108
      %v1213 = vmul.f32 %v985, %v1108
      %v1214 = vmul.f32 %v990, %v1108
      %v1215 = vmul.f32 %v995, %v1108
      %v1216 = vmul.f32 %v1000, %v1108
      %v1217 = vmul.f32 %v1005, %v1108
      %v1218 = vmul.f32 %v1010, %v1108
      %v1219 = vmul.f32 %v1015, %v1108
      %v1220 = vmul.f32 %v1020, %v1108
      %v1221 = vmul.f32 %v1025, %v1108
      %v1222 = vmul.f32 %v1030, %v1108
      %v1223 = vmul.f32 %v1035, %v1108
      %v1224 = vmul.f32 %v1040, %v1108
      %v1225 = vmul.f32 %v1045, %v1108
      %v1226 = vmul.f32 %v1050, %v1108
      %v1227 = vmul.f32 %v1055, %v1108
      %v1228 = vmul.f32 %v1060, %v1108
      %v1229 = vmul.f32 %v1065, %v1108
      %v1230 = vmul.f32 %v1070, %v1108
      %v1231 = vmul.f32 %v1075, %v1108
      %v1232 = vmul.f32 %v1080, %v1108
      %v1233 = vmul.f32 %v1085, %v1108
      %v1234 = vmul.f32 %v1090, %v1108
      %v1235 = vmul.f32 %v1095, %v1108
      %v1236 = vmul.f32 %v1100, %v1108
      %v1237 = vmul.f32 %v1105, %v1108
      %v1238 = vld [vmem:[%s2] sm:$0x1]
      %v1240 = vperm.slane %v1238, 0
      %v1242 = vadd.f32 %v1110, %v1240
      %v1243 = vadd.f32 %v1111, %v1240
      %v1244 = vadd.f32 %v1112, %v1240
      %v1245 = vadd.f32 %v1113, %v1240
      %v1246 = vadd.f32 %v1114, %v1240
      %v1247 = vadd.f32 %v1115, %v1240
      %v1248 = vadd.f32 %v1116, %v1240
      %v1249 = vadd.f32 %v1117, %v1240
      %v1250 = vadd.f32 %v1118, %v1240
      %v1251 = vadd.f32 %v1119, %v1240
      %v1252 = vadd.f32 %v1120, %v1240
      %v1253 = vadd.f32 %v1121, %v1240
      %v1254 = vadd.f32 %v1122, %v1240
      %v1255 = vadd.f32 %v1123, %v1240
      %v1256 = vadd.f32 %v1124, %v1240
      %v1257 = vadd.f32 %v1125, %v1240
      %v1258 = vadd.f32 %v1126, %v1240
      %v1259 = vadd.f32 %v1127, %v1240
      %v1260 = vadd.f32 %v1128, %v1240
      %v1261 = vadd.f32 %v1129, %v1240
      %v1262 = vadd.f32 %v1130, %v1240
      %v1263 = vadd.f32 %v1131, %v1240
      %v1264 = vadd.f32 %v1132, %v1240
      %v1265 = vadd.f32 %v1133, %v1240
      %v1266 = vadd.f32 %v1134, %v1240
      %v1267 = vadd.f32 %v1135, %v1240
      %v1268 = vadd.f32 %v1136, %v1240
      %v1269 = vadd.f32 %v1137, %v1240
      %v1270 = vadd.f32 %v1138, %v1240
      %v1271 = vadd.f32 %v1139, %v1240
      %v1272 = vadd.f32 %v1140, %v1240
      %v1273 = vadd.f32 %v1141, %v1240
      %v1274 = vadd.f32 %v1142, %v1240
      %v1275 = vadd.f32 %v1143, %v1240
      %v1276 = vadd.f32 %v1144, %v1240
      %v1277 = vadd.f32 %v1145, %v1240
      %v1278 = vadd.f32 %v1146, %v1240
      %v1279 = vadd.f32 %v1147, %v1240
      %v1280 = vadd.f32 %v1148, %v1240
      %v1281 = vadd.f32 %v1149, %v1240
      %v1282 = vadd.f32 %v1150, %v1240
      %v1283 = vadd.f32 %v1151, %v1240
      %v1284 = vadd.f32 %v1152, %v1240
      %v1285 = vadd.f32 %v1153, %v1240
      %v1286 = vadd.f32 %v1154, %v1240
      %v1287 = vadd.f32 %v1155, %v1240
      %v1288 = vadd.f32 %v1156, %v1240
      %v1289 = vadd.f32 %v1157, %v1240
      %v1290 = vadd.f32 %v1158, %v1240
      %v1291 = vadd.f32 %v1159, %v1240
      %v1292 = vadd.f32 %v1160, %v1240
      %v1293 = vadd.f32 %v1161, %v1240
      %v1294 = vadd.f32 %v1162, %v1240
      %v1295 = vadd.f32 %v1163, %v1240
      %v1296 = vadd.f32 %v1164, %v1240
      %v1297 = vadd.f32 %v1165, %v1240
      %v1298 = vadd.f32 %v1166, %v1240
      %v1299 = vadd.f32 %v1167, %v1240
      %v1300 = vadd.f32 %v1168, %v1240
      %v1301 = vadd.f32 %v1169, %v1240
      %v1302 = vadd.f32 %v1170, %v1240
      %v1303 = vadd.f32 %v1171, %v1240
      %v1304 = vadd.f32 %v1172, %v1240
      %v1305 = vadd.f32 %v1173, %v1240
      %v1306 = vadd.f32 %v1174, %v1240
      %v1307 = vadd.f32 %v1175, %v1240
      %v1308 = vadd.f32 %v1176, %v1240
      %v1309 = vadd.f32 %v1177, %v1240
      %v1310 = vadd.f32 %v1178, %v1240
      %v1311 = vadd.f32 %v1179, %v1240
      %v1312 = vadd.f32 %v1180, %v1240
      %v1313 = vadd.f32 %v1181, %v1240
      %v1314 = vadd.f32 %v1182, %v1240
      %v1315 = vadd.f32 %v1183, %v1240
      %v1316 = vadd.f32 %v1184, %v1240
      %v1317 = vadd.f32 %v1185, %v1240
      %v1318 = vadd.f32 %v1186, %v1240
      %v1319 = vadd.f32 %v1187, %v1240
      %v1320 = vadd.f32 %v1188, %v1240
      %v1321 = vadd.f32 %v1189, %v1240
      %v1322 = vadd.f32 %v1190, %v1240
      %v1323 = vadd.f32 %v1191, %v1240
      %v1324 = vadd.f32 %v1192, %v1240
      %v1325 = vadd.f32 %v1193, %v1240
      %v1326 = vadd.f32 %v1194, %v1240
      %v1327 = vadd.f32 %v1195, %v1240
      %v1328 = vadd.f32 %v1196, %v1240
      %v1329 = vadd.f32 %v1197, %v1240
      %v1330 = vadd.f32 %v1198, %v1240
      %v1331 = vadd.f32 %v1199, %v1240
      %v1332 = vadd.f32 %v1200, %v1240
      %v1333 = vadd.f32 %v1201, %v1240
      %v1334 = vadd.f32 %v1202, %v1240
      %v1335 = vadd.f32 %v1203, %v1240
      %v1336 = vadd.f32 %v1204, %v1240
      %v1337 = vadd.f32 %v1205, %v1240
      %v1338 = vadd.f32 %v1206, %v1240
      %v1339 = vadd.f32 %v1207, %v1240
      %v1340 = vadd.f32 %v1208, %v1240
      %v1341 = vadd.f32 %v1209, %v1240
      %v1342 = vadd.f32 %v1210, %v1240
      %v1343 = vadd.f32 %v1211, %v1240
      %v1344 = vadd.f32 %v1212, %v1240
      %v1345 = vadd.f32 %v1213, %v1240
      %v1346 = vadd.f32 %v1214, %v1240
      %v1347 = vadd.f32 %v1215, %v1240
      %v1348 = vadd.f32 %v1216, %v1240
      %v1349 = vadd.f32 %v1217, %v1240
      %v1350 = vadd.f32 %v1218, %v1240
      %v1351 = vadd.f32 %v1219, %v1240
      %v1352 = vadd.f32 %v1220, %v1240
      %v1353 = vadd.f32 %v1221, %v1240
      %v1354 = vadd.f32 %v1222, %v1240
      %v1355 = vadd.f32 %v1223, %v1240
      %v1356 = vadd.f32 %v1224, %v1240
      %v1357 = vadd.f32 %v1225, %v1240
      %v1358 = vadd.f32 %v1226, %v1240
      %v1359 = vadd.f32 %v1227, %v1240
      %v1360 = vadd.f32 %v1228, %v1240
      %v1361 = vadd.f32 %v1229, %v1240
      %v1362 = vadd.f32 %v1230, %v1240
      %v1363 = vadd.f32 %v1231, %v1240
      %v1364 = vadd.f32 %v1232, %v1240
      %v1365 = vadd.f32 %v1233, %v1240
      %v1366 = vadd.f32 %v1234, %v1240
      %v1367 = vadd.f32 %v1235, %v1240
      %v1368 = vadd.f32 %v1236, %v1240
      %v1369 = vadd.f32 %v1237, %v1240
      %v1370 = vtanh.pop %v1242
      %v1371 = vtanh.pop %v1243
      %v1372 = vtanh.pop %v1244
      %v1373 = vtanh.pop %v1245
      %v1374 = vtanh.pop %v1246
      %v1375 = vtanh.pop %v1247
      %v1376 = vtanh.pop %v1248
      %v1377 = vtanh.pop %v1249
      %v1378 = vtanh.pop %v1250
      %v1379 = vtanh.pop %v1251
      %v1380 = vtanh.pop %v1252
      %v1381 = vtanh.pop %v1253
      %v1382 = vtanh.pop %v1254
      %v1383 = vtanh.pop %v1255
      %v1384 = vtanh.pop %v1256
      %v1385 = vtanh.pop %v1257
      %v1386 = vtanh.pop %v1258
      %v1387 = vtanh.pop %v1259
      %v1388 = vtanh.pop %v1260
      %v1389 = vtanh.pop %v1261
      %v1390 = vtanh.pop %v1262
      %v1391 = vtanh.pop %v1263
      %v1392 = vtanh.pop %v1264
      %v1393 = vtanh.pop %v1265
      %v1394 = vtanh.pop %v1266
      %v1395 = vtanh.pop %v1267
      %v1396 = vtanh.pop %v1268
      %v1397 = vtanh.pop %v1269
      %v1398 = vtanh.pop %v1270
      %v1399 = vtanh.pop %v1271
      %v1400 = vtanh.pop %v1272
      %v1401 = vtanh.pop %v1273
      %v1402 = vtanh.pop %v1274
      %v1403 = vtanh.pop %v1275
      %v1404 = vtanh.pop %v1276
      %v1405 = vtanh.pop %v1277
      %v1406 = vtanh.pop %v1278
      %v1407 = vtanh.pop %v1279
      %v1408 = vtanh.pop %v1280
      %v1409 = vtanh.pop %v1281
      %v1410 = vtanh.pop %v1282
      %v1411 = vtanh.pop %v1283
      %v1412 = vtanh.pop %v1284
      %v1413 = vtanh.pop %v1285
      %v1414 = vtanh.pop %v1286
      %v1415 = vtanh.pop %v1287
      %v1416 = vtanh.pop %v1288
      %v1417 = vtanh.pop %v1289
      %v1418 = vtanh.pop %v1290
      %v1419 = vtanh.pop %v1291
      %v1420 = vtanh.pop %v1292
      %v1421 = vtanh.pop %v1293
      %v1422 = vtanh.pop %v1294
      %v1423 = vtanh.pop %v1295
      %v1424 = vtanh.pop %v1296
      %v1425 = vtanh.pop %v1297
      %v1426 = vtanh.pop %v1298
      %v1427 = vtanh.pop %v1299
      %v1428 = vtanh.pop %v1300
      %v1429 = vtanh.pop %v1301
      %v1430 = vtanh.pop %v1302
      %v1431 = vtanh.pop %v1303
      %v1432 = vtanh.pop %v1304
      %v1433 = vtanh.pop %v1305
      %v1434 = vtanh.pop %v1306
      %v1435 = vtanh.pop %v1307
      %v1436 = vtanh.pop %v1308
      %v1437 = vtanh.pop %v1309
      %v1438 = vtanh.pop %v1310
      %v1439 = vtanh.pop %v1311
      %v1440 = vtanh.pop %v1312
      %v1441 = vtanh.pop %v1313
      %v1442 = vtanh.pop %v1314
      %v1443 = vtanh.pop %v1315
      %v1444 = vtanh.pop %v1316
      %v1445 = vtanh.pop %v1317
      %v1446 = vtanh.pop %v1318
      %v1447 = vtanh.pop %v1319
      %v1448 = vtanh.pop %v1320
      %v1449 = vtanh.pop %v1321
      %v1450 = vtanh.pop %v1322
      %v1451 = vtanh.pop %v1323
      %v1452 = vtanh.pop %v1324
      %v1453 = vtanh.pop %v1325
      %v1454 = vtanh.pop %v1326
      %v1455 = vtanh.pop %v1327
      %v1456 = vtanh.pop %v1328
      %v1457 = vtanh.pop %v1329
      %v1458 = vtanh.pop %v1330
      %v1459 = vtanh.pop %v1331
      %v1460 = vtanh.pop %v1332
      %v1461 = vtanh.pop %v1333
      %v1462 = vtanh.pop %v1334
      %v1463 = vtanh.pop %v1335
      %v1464 = vtanh.pop %v1336
      %v1465 = vtanh.pop %v1337
      %v1466 = vtanh.pop %v1338
      %v1467 = vtanh.pop %v1339
      %v1468 = vtanh.pop %v1340
      %v1469 = vtanh.pop %v1341
      %v1470 = vtanh.pop %v1342
      %v1471 = vtanh.pop %v1343
      %v1472 = vtanh.pop %v1344
      %v1473 = vtanh.pop %v1345
      %v1474 = vtanh.pop %v1346
      %v1475 = vtanh.pop %v1347
      %v1476 = vtanh.pop %v1348
      %v1477 = vtanh.pop %v1349
      %v1478 = vtanh.pop %v1350
      %v1479 = vtanh.pop %v1351
      %v1480 = vtanh.pop %v1352
      %v1481 = vtanh.pop %v1353
      %v1482 = vtanh.pop %v1354
      %v1483 = vtanh.pop %v1355
      %v1484 = vtanh.pop %v1356
      %v1485 = vtanh.pop %v1357
      %v1486 = vtanh.pop %v1358
      %v1487 = vtanh.pop %v1359
      %v1488 = vtanh.pop %v1360
      %v1489 = vtanh.pop %v1361
      %v1490 = vtanh.pop %v1362
      %v1491 = vtanh.pop %v1363
      %v1492 = vtanh.pop %v1364
      %v1493 = vtanh.pop %v1365
      %v1494 = vtanh.pop %v1366
      %v1495 = vtanh.pop %v1367
      %v1496 = vtanh.pop %v1368
      %v1497 = vtanh.pop %v1369
      %v1498 = vld [vmem:[%s3] sm:$0xff]
      %v1499 = vld [vmem:[%s3 + $0x8] sm:$0xff]
      %v1500 = vld [vmem:[%s3 + $0x10] sm:$0xff]
      %v1501 = vld [vmem:[%s3 + $0x18] sm:$0xff]
      %v1502 = vld [vmem:[%s3 + $0x20] sm:$0xff]
      %v1503 = vld [vmem:[%s3 + $0x28] sm:$0xff]
      %v1504 = vld [vmem:[%s3 + $0x30] sm:$0xff]
      %v1505 = vld [vmem:[%s3 + $0x38] sm:$0xff]
      %v1506 = vld [vmem:[%s3 + $0x40] sm:$0xff]
      %v1507 = vld [vmem:[%s3 + $0x48] sm:$0xff]
      %v1508 = vld [vmem:[%s3 + $0x50] sm:$0xff]
      %v1509 = vld [vmem:[%s3 + $0x58] sm:$0xff]
      %v1510 = vld [vmem:[%s3 + $0x60] sm:$0xff]
      %v1511 = vld [vmem:[%s3 + $0x68] sm:$0xff]
      %v1512 = vld [vmem:[%s3 + $0x70] sm:$0xff]
      %v1513 = vld [vmem:[%s3 + $0x78] sm:$0xff]
      %v1514 = vld [vmem:[%s4] sm:$0x1]
      %v1516 = vperm.slane %v1514, 0
      %1518 = vmatpush.msra.mxu0 %v1513
      %1519 = vmatpush.msra.mxu0 %v1512
      %1520 = vmatpush.msra.mxu0 %v1511
      %1521 = vmatpush.msra.mxu0 %v1510
      %1522 = vmatpush.msra.mxu0 %v1509
      %1523 = vmatpush.msra.mxu0 %v1508
      %1524 = vmatpush.msra.mxu0 %v1507
      %1525 = vmatpush.msra.mxu0 %v1506
      %1526 = vmatpush.msra.mxu0 %v1505
      %1527 = vmatpush.msra.mxu0 %v1504
      %1528 = vmatpush.msra.mxu0 %v1503
      %1529 = vmatpush.msra.mxu0 %v1502
      %1530 = vmatpush.msra.mxu0 %v1501
      %1531 = vmatpush.msra.mxu0 %v1500
      %1532 = vmatpush.msra.mxu0 %v1499
      %1533 = vmatpush.msra.mxu0 %v1498
      %1534 = vmatmul.f32.gmra.mxu0 %v1370
      %v1535 = vpop.f32.mrf.mxu0
      %v1536 = vadd.f32 %v1516, %v1535
      %1537 = vmatmul.f32.gmra.mxu0 %v1371
      %v1538 = vpop.f32.mrf.mxu0
      %v1539 = vadd.f32 %v1516, %v1538
      %1540 = vmatmul.f32.gmra.mxu0 %v1372
      %v1541 = vpop.f32.mrf.mxu0
      %v1542 = vadd.f32 %v1516, %v1541
      %1543 = vmatmul.f32.gmra.mxu0 %v1373
      %v1544 = vpop.f32.mrf.mxu0
      %v1545 = vadd.f32 %v1516, %v1544
      %1546 = vmatmul.f32.gmra.mxu0 %v1374
      %v1547 = vpop.f32.mrf.mxu0
      %v1548 = vadd.f32 %v1516, %v1547
      %1549 = vmatmul.f32.gmra.mxu0 %v1375
      %v1550 = vpop.f32.mrf.mxu0
      %v1551 = vadd.f32 %v1516, %v1550
      %1552 = vmatmul.f32.gmra.mxu0 %v1376
      %v1553 = vpop.f32.mrf.mxu0
      %v1554 = vadd.f32 %v1516, %v1553
      %1555 = vmatmul.f32.gmra.mxu0 %v1377
      %v1556 = vpop.f32.mrf.mxu0
      %v1557 = vadd.f32 %v1516, %v1556
      %1558 = vmatmul.f32.gmra.mxu0 %v1378
      %v1559 = vpop.f32.mrf.mxu0
      %v1560 = vadd.f32 %v1516, %v1559
      %1561 = vmatmul.f32.gmra.mxu0 %v1379
      %v1562 = vpop.f32.mrf.mxu0
      %v1563 = vadd.f32 %v1516, %v1562
      %1564 = vmatmul.f32.gmra.mxu0 %v1380
      %v1565 = vpop.f32.mrf.mxu0
      %v1566 = vadd.f32 %v1516, %v1565
      %1567 = vmatmul.f32.gmra.mxu0 %v1381
      %v1568 = vpop.f32.mrf.mxu0
      %v1569 = vadd.f32 %v1516, %v1568
      %1570 = vmatmul.f32.gmra.mxu0 %v1382
      %v1571 = vpop.f32.mrf.mxu0
      %v1572 = vadd.f32 %v1516, %v1571
      %1573 = vmatmul.f32.gmra.mxu0 %v1383
      %v1574 = vpop.f32.mrf.mxu0
      %v1575 = vadd.f32 %v1516, %v1574
      %1576 = vmatmul.f32.gmra.mxu0 %v1384
      %v1577 = vpop.f32.mrf.mxu0
      %v1578 = vadd.f32 %v1516, %v1577
      %1579 = vmatmul.f32.gmra.mxu0 %v1385
      %v1580 = vpop.f32.mrf.mxu0
      %v1581 = vadd.f32 %v1516, %v1580
      %1582 = vmatmul.f32.gmra.mxu0 %v1386
      %v1583 = vpop.f32.mrf.mxu0
      %v1584 = vadd.f32 %v1516, %v1583
      %1585 = vmatmul.f32.gmra.mxu0 %v1387
      %v1586 = vpop.f32.mrf.mxu0
      %v1587 = vadd.f32 %v1516, %v1586
      %1588 = vmatmul.f32.gmra.mxu0 %v1388
      %v1589 = vpop.f32.mrf.mxu0
      %v1590 = vadd.f32 %v1516, %v1589
      %1591 = vmatmul.f32.gmra.mxu0 %v1389
      %v1592 = vpop.f32.mrf.mxu0
      %v1593 = vadd.f32 %v1516, %v1592
      %1594 = vmatmul.f32.gmra.mxu0 %v1390
      %v1595 = vpop.f32.mrf.mxu0
      %v1596 = vadd.f32 %v1516, %v1595
      %1597 = vmatmul.f32.gmra.mxu0 %v1391
      %v1598 = vpop.f32.mrf.mxu0
      %v1599 = vadd.f32 %v1516, %v1598
      %1600 = vmatmul.f32.gmra.mxu0 %v1392
      %v1601 = vpop.f32.mrf.mxu0
      %v1602 = vadd.f32 %v1516, %v1601
      %1603 = vmatmul.f32.gmra.mxu0 %v1393
      %v1604 = vpop.f32.mrf.mxu0
      %v1605 = vadd.f32 %v1516, %v1604
      %1606 = vmatmul.f32.gmra.mxu0 %v1394
      %v1607 = vpop.f32.mrf.mxu0
      %v1608 = vadd.f32 %v1516, %v1607
      %1609 = vmatmul.f32.gmra.mxu0 %v1395
      %v1610 = vpop.f32.mrf.mxu0
      %v1611 = vadd.f32 %v1516, %v1610
      %1612 = vmatmul.f32.gmra.mxu0 %v1396
      %v1613 = vpop.f32.mrf.mxu0
      %v1614 = vadd.f32 %v1516, %v1613
      %1615 = vmatmul.f32.gmra.mxu0 %v1397
      %v1616 = vpop.f32.mrf.mxu0
      %v1617 = vadd.f32 %v1516, %v1616
      %1618 = vmatmul.f32.gmra.mxu0 %v1398
      %v1619 = vpop.f32.mrf.mxu0
      %v1620 = vadd.f32 %v1516, %v1619
      %1621 = vmatmul.f32.gmra.mxu0 %v1399
      %v1622 = vpop.f32.mrf.mxu0
      %v1623 = vadd.f32 %v1516, %v1622
      %1624 = vmatmul.f32.gmra.mxu0 %v1400
      %v1625 = vpop.f32.mrf.mxu0
      %v1626 = vadd.f32 %v1516, %v1625
      %1627 = vmatmul.f32.gmra.mxu0 %v1401
      %v1628 = vpop.f32.mrf.mxu0
      %v1629 = vadd.f32 %v1516, %v1628
      %1630 = vmatmul.f32.gmra.mxu0 %v1402
      %v1631 = vpop.f32.mrf.mxu0
      %v1632 = vadd.f32 %v1516, %v1631
      %1633 = vmatmul.f32.gmra.mxu0 %v1403
      %v1634 = vpop.f32.mrf.mxu0
      %v1635 = vadd.f32 %v1516, %v1634
      %1636 = vmatmul.f32.gmra.mxu0 %v1404
      %v1637 = vpop.f32.mrf.mxu0
      %v1638 = vadd.f32 %v1516, %v1637
      %1639 = vmatmul.f32.gmra.mxu0 %v1405
      %v1640 = vpop.f32.mrf.mxu0
      %v1641 = vadd.f32 %v1516, %v1640
      %1642 = vmatmul.f32.gmra.mxu0 %v1406
      %v1643 = vpop.f32.mrf.mxu0
      %v1644 = vadd.f32 %v1516, %v1643
      %1645 = vmatmul.f32.gmra.mxu0 %v1407
      %v1646 = vpop.f32.mrf.mxu0
      %v1647 = vadd.f32 %v1516, %v1646
      %1648 = vmatmul.f32.gmra.mxu0 %v1408
      %v1649 = vpop.f32.mrf.mxu0
      %v1650 = vadd.f32 %v1516, %v1649
      %1651 = vmatmul.f32.gmra.mxu0 %v1409
      %v1652 = vpop.f32.mrf.mxu0
      %v1653 = vadd.f32 %v1516, %v1652
      %1654 = vmatmul.f32.gmra.mxu0 %v1410
      %v1655 = vpop.f32.mrf.mxu0
      %v1656 = vadd.f32 %v1516, %v1655
      %1657 = vmatmul.f32.gmra.mxu0 %v1411
      %v1658 = vpop.f32.mrf.mxu0
      %v1659 = vadd.f32 %v1516, %v1658
      %1660 = vmatmul.f32.gmra.mxu0 %v1412
      %v1661 = vpop.f32.mrf.mxu0
      %v1662 = vadd.f32 %v1516, %v1661
      %1663 = vmatmul.f32.gmra.mxu0 %v1413
      %v1664 = vpop.f32.mrf.mxu0
      %v1665 = vadd.f32 %v1516, %v1664
      %1666 = vmatmul.f32.gmra.mxu0 %v1414
      %v1667 = vpop.f32.mrf.mxu0
      %v1668 = vadd.f32 %v1516, %v1667
      %1669 = vmatmul.f32.gmra.mxu0 %v1415
      %v1670 = vpop.f32.mrf.mxu0
      %v1671 = vadd.f32 %v1516, %v1670
      %1672 = vmatmul.f32.gmra.mxu0 %v1416
      %v1673 = vpop.f32.mrf.mxu0
      %v1674 = vadd.f32 %v1516, %v1673
      %1675 = vmatmul.f32.gmra.mxu0 %v1417
      %v1676 = vpop.f32.mrf.mxu0
      %v1677 = vadd.f32 %v1516, %v1676
      %1678 = vmatmul.f32.gmra.mxu0 %v1418
      %v1679 = vpop.f32.mrf.mxu0
      %v1680 = vadd.f32 %v1516, %v1679
      %1681 = vmatmul.f32.gmra.mxu0 %v1419
      %v1682 = vpop.f32.mrf.mxu0
      %v1683 = vadd.f32 %v1516, %v1682
      %1684 = vmatmul.f32.gmra.mxu0 %v1420
      %v1685 = vpop.f32.mrf.mxu0
      %v1686 = vadd.f32 %v1516, %v1685
      %1687 = vmatmul.f32.gmra.mxu0 %v1421
      %v1688 = vpop.f32.mrf.mxu0
      %v1689 = vadd.f32 %v1516, %v1688
      %1690 = vmatmul.f32.gmra.mxu0 %v1422
      %v1691 = vpop.f32.mrf.mxu0
      %v1692 = vadd.f32 %v1516, %v1691
      %1693 = vmatmul.f32.gmra.mxu0 %v1423
      %v1694 = vpop.f32.mrf.mxu0
      %v1695 = vadd.f32 %v1516, %v1694
      %1696 = vmatmul.f32.gmra.mxu0 %v1424
      %v1697 = vpop.f32.mrf.mxu0
      %v1698 = vadd.f32 %v1516, %v1697
      %1699 = vmatmul.f32.gmra.mxu0 %v1425
      %v1700 = vpop.f32.mrf.mxu0
      %v1701 = vadd.f32 %v1516, %v1700
      %1702 = vmatmul.f32.gmra.mxu0 %v1426
      %v1703 = vpop.f32.mrf.mxu0
      %v1704 = vadd.f32 %v1516, %v1703
      %1705 = vmatmul.f32.gmra.mxu0 %v1427
      %v1706 = vpop.f32.mrf.mxu0
      %v1707 = vadd.f32 %v1516, %v1706
      %1708 = vmatmul.f32.gmra.mxu0 %v1428
      %v1709 = vpop.f32.mrf.mxu0
      %v1710 = vadd.f32 %v1516, %v1709
      %1711 = vmatmul.f32.gmra.mxu0 %v1429
      %v1712 = vpop.f32.mrf.mxu0
      %v1713 = vadd.f32 %v1516, %v1712
      %1714 = vmatmul.f32.gmra.mxu0 %v1430
      %v1715 = vpop.f32.mrf.mxu0
      %v1716 = vadd.f32 %v1516, %v1715
      %1717 = vmatmul.f32.gmra.mxu0 %v1431
      %v1718 = vpop.f32.mrf.mxu0
      %v1719 = vadd.f32 %v1516, %v1718
      %1720 = vmatmul.f32.gmra.mxu0 %v1432
      %v1721 = vpop.f32.mrf.mxu0
      %v1722 = vadd.f32 %v1516, %v1721
      %1723 = vmatmul.f32.gmra.mxu0 %v1433
      %v1724 = vpop.f32.mrf.mxu0
      %v1725 = vadd.f32 %v1516, %v1724
      %1726 = vmatmul.f32.gmra.mxu0 %v1434
      %v1727 = vpop.f32.mrf.mxu0
      %v1728 = vadd.f32 %v1516, %v1727
      %1729 = vmatmul.f32.gmra.mxu0 %v1435
      %v1730 = vpop.f32.mrf.mxu0
      %v1731 = vadd.f32 %v1516, %v1730
      %1732 = vmatmul.f32.gmra.mxu0 %v1436
      %v1733 = vpop.f32.mrf.mxu0
      %v1734 = vadd.f32 %v1516, %v1733
      %1735 = vmatmul.f32.gmra.mxu0 %v1437
      %v1736 = vpop.f32.mrf.mxu0
      %v1737 = vadd.f32 %v1516, %v1736
      %1738 = vmatmul.f32.gmra.mxu0 %v1438
      %v1739 = vpop.f32.mrf.mxu0
      %v1740 = vadd.f32 %v1516, %v1739
      %1741 = vmatmul.f32.gmra.mxu0 %v1439
      %v1742 = vpop.f32.mrf.mxu0
      %v1743 = vadd.f32 %v1516, %v1742
      %1744 = vmatmul.f32.gmra.mxu0 %v1440
      %v1745 = vpop.f32.mrf.mxu0
      %v1746 = vadd.f32 %v1516, %v1745
      %1747 = vmatmul.f32.gmra.mxu0 %v1441
      %v1748 = vpop.f32.mrf.mxu0
      %v1749 = vadd.f32 %v1516, %v1748
      %1750 = vmatmul.f32.gmra.mxu0 %v1442
      %v1751 = vpop.f32.mrf.mxu0
      %v1752 = vadd.f32 %v1516, %v1751
      %1753 = vmatmul.f32.gmra.mxu0 %v1443
      %v1754 = vpop.f32.mrf.mxu0
      %v1755 = vadd.f32 %v1516, %v1754
      %1756 = vmatmul.f32.gmra.mxu0 %v1444
      %v1757 = vpop.f32.mrf.mxu0
      %v1758 = vadd.f32 %v1516, %v1757
      %1759 = vmatmul.f32.gmra.mxu0 %v1445
      %v1760 = vpop.f32.mrf.mxu0
      %v1761 = vadd.f32 %v1516, %v1760
      %1762 = vmatmul.f32.gmra.mxu0 %v1446
      %v1763 = vpop.f32.mrf.mxu0
      %v1764 = vadd.f32 %v1516, %v1763
      %1765 = vmatmul.f32.gmra.mxu0 %v1447
      %v1766 = vpop.f32.mrf.mxu0
      %v1767 = vadd.f32 %v1516, %v1766
      %1768 = vmatmul.f32.gmra.mxu0 %v1448
      %v1769 = vpop.f32.mrf.mxu0
      %v1770 = vadd.f32 %v1516, %v1769
      %1771 = vmatmul.f32.gmra.mxu0 %v1449
      %v1772 = vpop.f32.mrf.mxu0
      %v1773 = vadd.f32 %v1516, %v1772
      %1774 = vmatmul.f32.gmra.mxu0 %v1450
      %v1775 = vpop.f32.mrf.mxu0
      %v1776 = vadd.f32 %v1516, %v1775
      %1777 = vmatmul.f32.gmra.mxu0 %v1451
      %v1778 = vpop.f32.mrf.mxu0
      %v1779 = vadd.f32 %v1516, %v1778
      %1780 = vmatmul.f32.gmra.mxu0 %v1452
      %v1781 = vpop.f32.mrf.mxu0
      %v1782 = vadd.f32 %v1516, %v1781
      %1783 = vmatmul.f32.gmra.mxu0 %v1453
      %v1784 = vpop.f32.mrf.mxu0
      %v1785 = vadd.f32 %v1516, %v1784
      %1786 = vmatmul.f32.gmra.mxu0 %v1454
      %v1787 = vpop.f32.mrf.mxu0
      %v1788 = vadd.f32 %v1516, %v1787
      %1789 = vmatmul.f32.gmra.mxu0 %v1455
      %v1790 = vpop.f32.mrf.mxu0
      %v1791 = vadd.f32 %v1516, %v1790
      %1792 = vmatmul.f32.gmra.mxu0 %v1456
      %v1793 = vpop.f32.mrf.mxu0
      %v1794 = vadd.f32 %v1516, %v1793
      %1795 = vmatmul.f32.gmra.mxu0 %v1457
      %v1796 = vpop.f32.mrf.mxu0
      %v1797 = vadd.f32 %v1516, %v1796
      %1798 = vmatmul.f32.gmra.mxu0 %v1458
      %v1799 = vpop.f32.mrf.mxu0
      %v1800 = vadd.f32 %v1516, %v1799
      %1801 = vmatmul.f32.gmra.mxu0 %v1459
      %v1802 = vpop.f32.mrf.mxu0
      %v1803 = vadd.f32 %v1516, %v1802
      %1804 = vmatmul.f32.gmra.mxu0 %v1460
      %v1805 = vpop.f32.mrf.mxu0
      %v1806 = vadd.f32 %v1516, %v1805
      %1807 = vmatmul.f32.gmra.mxu0 %v1461
      %v1808 = vpop.f32.mrf.mxu0
      %v1809 = vadd.f32 %v1516, %v1808
      %1810 = vmatmul.f32.gmra.mxu0 %v1462
      %v1811 = vpop.f32.mrf.mxu0
      %v1812 = vadd.f32 %v1516, %v1811
      %1813 = vmatmul.f32.gmra.mxu0 %v1463
      %v1814 = vpop.f32.mrf.mxu0
      %v1815 = vadd.f32 %v1516, %v1814
      %1816 = vmatmul.f32.gmra.mxu0 %v1464
      %v1817 = vpop.f32.mrf.mxu0
      %v1818 = vadd.f32 %v1516, %v1817
      %1819 = vmatmul.f32.gmra.mxu0 %v1465
      %v1820 = vpop.f32.mrf.mxu0
      %v1821 = vadd.f32 %v1516, %v1820
      %1822 = vmatmul.f32.gmra.mxu0 %v1466
      %v1823 = vpop.f32.mrf.mxu0
      %v1824 = vadd.f32 %v1516, %v1823
      %1825 = vmatmul.f32.gmra.mxu0 %v1467
      %v1826 = vpop.f32.mrf.mxu0
      %v1827 = vadd.f32 %v1516, %v1826
      %1828 = vmatmul.f32.gmra.mxu0 %v1468
      %v1829 = vpop.f32.mrf.mxu0
      %v1830 = vadd.f32 %v1516, %v1829
      %1831 = vmatmul.f32.gmra.mxu0 %v1469
      %v1832 = vpop.f32.mrf.mxu0
      %v1833 = vadd.f32 %v1516, %v1832
      %1834 = vmatmul.f32.gmra.mxu0 %v1470
      %v1835 = vpop.f32.mrf.mxu0
      %v1836 = vadd.f32 %v1516, %v1835
      %1837 = vmatmul.f32.gmra.mxu0 %v1471
      %v1838 = vpop.f32.mrf.mxu0
      %v1839 = vadd.f32 %v1516, %v1838
      %1840 = vmatmul.f32.gmra.mxu0 %v1472
      %v1841 = vpop.f32.mrf.mxu0
      %v1842 = vadd.f32 %v1516, %v1841
      %1843 = vmatmul.f32.gmra.mxu0 %v1473
      %v1844 = vpop.f32.mrf.mxu0
      %v1845 = vadd.f32 %v1516, %v1844
      %1846 = vmatmul.f32.gmra.mxu0 %v1474
      %v1847 = vpop.f32.mrf.mxu0
      %v1848 = vadd.f32 %v1516, %v1847
      %1849 = vmatmul.f32.gmra.mxu0 %v1475
      %v1850 = vpop.f32.mrf.mxu0
      %v1851 = vadd.f32 %v1516, %v1850
      %1852 = vmatmul.f32.gmra.mxu0 %v1476
      %v1853 = vpop.f32.mrf.mxu0
      %v1854 = vadd.f32 %v1516, %v1853
      %1855 = vmatmul.f32.gmra.mxu0 %v1477
      %v1856 = vpop.f32.mrf.mxu0
      %v1857 = vadd.f32 %v1516, %v1856
      %1858 = vmatmul.f32.gmra.mxu0 %v1478
      %v1859 = vpop.f32.mrf.mxu0
      %v1860 = vadd.f32 %v1516, %v1859
      %1861 = vmatmul.f32.gmra.mxu0 %v1479
      %v1862 = vpop.f32.mrf.mxu0
      %v1863 = vadd.f32 %v1516, %v1862
      %1864 = vmatmul.f32.gmra.mxu0 %v1480
      %v1865 = vpop.f32.mrf.mxu0
      %v1866 = vadd.f32 %v1516, %v1865
      %1867 = vmatmul.f32.gmra.mxu0 %v1481
      %v1868 = vpop.f32.mrf.mxu0
      %v1869 = vadd.f32 %v1516, %v1868
      %1870 = vmatmul.f32.gmra.mxu0 %v1482
      %v1871 = vpop.f32.mrf.mxu0
      %v1872 = vadd.f32 %v1516, %v1871
      %1873 = vmatmul.f32.gmra.mxu0 %v1483
      %v1874 = vpop.f32.mrf.mxu0
      %v1875 = vadd.f32 %v1516, %v1874
      %1876 = vmatmul.f32.gmra.mxu0 %v1484
      %v1877 = vpop.f32.mrf.mxu0
      %v1878 = vadd.f32 %v1516, %v1877
      %1879 = vmatmul.f32.gmra.mxu0 %v1485
      %v1880 = vpop.f32.mrf.mxu0
      %v1881 = vadd.f32 %v1516, %v1880
      %1882 = vmatmul.f32.gmra.mxu0 %v1486
      %v1883 = vpop.f32.mrf.mxu0
      %v1884 = vadd.f32 %v1516, %v1883
      %1885 = vmatmul.f32.gmra.mxu0 %v1487
      %v1886 = vpop.f32.mrf.mxu0
      %v1887 = vadd.f32 %v1516, %v1886
      %1888 = vmatmul.f32.gmra.mxu0 %v1488
      %v1889 = vpop.f32.mrf.mxu0
      %v1890 = vadd.f32 %v1516, %v1889
      %1891 = vmatmul.f32.gmra.mxu0 %v1489
      %v1892 = vpop.f32.mrf.mxu0
      %v1893 = vadd.f32 %v1516, %v1892
      %1894 = vmatmul.f32.gmra.mxu0 %v1490
      %v1895 = vpop.f32.mrf.mxu0
      %v1896 = vadd.f32 %v1516, %v1895
      %1897 = vmatmul.f32.gmra.mxu0 %v1491
      %v1898 = vpop.f32.mrf.mxu0
      %v1899 = vadd.f32 %v1516, %v1898
      %1900 = vmatmul.f32.gmra.mxu0 %v1492
      %v1901 = vpop.f32.mrf.mxu0
      %v1902 = vadd.f32 %v1516, %v1901
      %1903 = vmatmul.f32.gmra.mxu0 %v1493
      %v1904 = vpop.f32.mrf.mxu0
      %v1905 = vadd.f32 %v1516, %v1904
      %1906 = vmatmul.f32.gmra.mxu0 %v1494
      %v1907 = vpop.f32.mrf.mxu0
      %v1908 = vadd.f32 %v1516, %v1907
      %1909 = vmatmul.f32.gmra.mxu0 %v1495
      %v1910 = vpop.f32.mrf.mxu0
      %v1911 = vadd.f32 %v1516, %v1910
      %1912 = vmatmul.f32.gmra.mxu0 %v1496
      %v1913 = vpop.f32.mrf.mxu0
      %v1914 = vadd.f32 %v1516, %v1913
      %1915 = vmatmul.f32.gmra.mxu0 %v1497
      %v1916 = vpop.f32.mrf.mxu0
      %v1917 = vadd.f32 %v1516, %v1916
      %1918 = vdwg.mxu0
      %v1919 = vtanh.pop %v1536
      %v1920 = vtanh.pop %v1539
      %v1921 = vtanh.pop %v1542
      %v1922 = vtanh.pop %v1545
      %v1923 = vtanh.pop %v1548
      %v1924 = vtanh.pop %v1551
      %v1925 = vtanh.pop %v1554
      %v1926 = vtanh.pop %v1557
      %v1927 = vtanh.pop %v1560
      %v1928 = vtanh.pop %v1563
      %v1929 = vtanh.pop %v1566
      %v1930 = vtanh.pop %v1569
      %v1931 = vtanh.pop %v1572
      %v1932 = vtanh.pop %v1575
      %v1933 = vtanh.pop %v1578
      %v1934 = vtanh.pop %v1581
      %v1935 = vtanh.pop %v1584
      %v1936 = vtanh.pop %v1587
      %v1937 = vtanh.pop %v1590
      %v1938 = vtanh.pop %v1593
      %v1939 = vtanh.pop %v1596
      %v1940 = vtanh.pop %v1599
      %v1941 = vtanh.pop %v1602
      %v1942 = vtanh.pop %v1605
      %v1943 = vtanh.pop %v1608
      %v1944 = vtanh.pop %v1611
      %v1945 = vtanh.pop %v1614
      %v1946 = vtanh.pop %v1617
      %v1947 = vtanh.pop %v1620
      %v1948 = vtanh.pop %v1623
      %v1949 = vtanh.pop %v1626
      %v1950 = vtanh.pop %v1629
      %v1951 = vtanh.pop %v1632
      %v1952 = vtanh.pop %v1635
      %v1953 = vtanh.pop %v1638
      %v1954 = vtanh.pop %v1641
      %v1955 = vtanh.pop %v1644
      %v1956 = vtanh.pop %v1647
      %v1957 = vtanh.pop %v1650
      %v1958 = vtanh.pop %v1653
      %v1959 = vtanh.pop %v1656
      %v1960 = vtanh.pop %v1659
      %v1961 = vtanh.pop %v1662
      %v1962 = vtanh.pop %v1665
      %v1963 = vtanh.pop %v1668
      %v1964 = vtanh.pop %v1671
      %v1965 = vtanh.pop %v1674
      %v1966 = vtanh.pop %v1677
      %v1967 = vtanh.pop %v1680
      %v1968 = vtanh.pop %v1683
      %v1969 = vtanh.pop %v1686
      %v1970 = vtanh.pop %v1689
      %v1971 = vtanh.pop %v1692
      %v1972 = vtanh.pop %v1695
      %v1973 = vtanh.pop %v1698
      %v1974 = vtanh.pop %v1701
      %v1975 = vtanh.pop %v1704
      %v1976 = vtanh.pop %v1707
      %v1977 = vtanh.pop %v1710
      %v1978 = vtanh.pop %v1713
      %v1979 = vtanh.pop %v1716
      %v1980 = vtanh.pop %v1719
      %v1981 = vtanh.pop %v1722
      %v1982 = vtanh.pop %v1725
      %v1983 = vtanh.pop %v1728
      %v1984 = vtanh.pop %v1731
      %v1985 = vtanh.pop %v1734
      %v1986 = vtanh.pop %v1737
      %v1987 = vtanh.pop %v1740
      %v1988 = vtanh.pop %v1743
      %v1989 = vtanh.pop %v1746
      %v1990 = vtanh.pop %v1749
      %v1991 = vtanh.pop %v1752
      %v1992 = vtanh.pop %v1755
      %v1993 = vtanh.pop %v1758
      %v1994 = vtanh.pop %v1761
      %v1995 = vtanh.pop %v1764
      %v1996 = vtanh.pop %v1767
      %v1997 = vtanh.pop %v1770
      %v1998 = vtanh.pop %v1773
      %v1999 = vtanh.pop %v1776
      %v2000 = vtanh.pop %v1779
      %v2001 = vtanh.pop %v1782
      %v2002 = vtanh.pop %v1785
      %v2003 = vtanh.pop %v1788
      %v2004 = vtanh.pop %v1791
      %v2005 = vtanh.pop %v1794
      %v2006 = vtanh.pop %v1797
      %v2007 = vtanh.pop %v1800
      %v2008 = vtanh.pop %v1803
      %v2009 = vtanh.pop %v1806
      %v2010 = vtanh.pop %v1809
      %v2011 = vtanh.pop %v1812
      %v2012 = vtanh.pop %v1815
      %v2013 = vtanh.pop %v1818
      %v2014 = vtanh.pop %v1821
      %v2015 = vtanh.pop %v1824
      %v2016 = vtanh.pop %v1827
      %v2017 = vtanh.pop %v1830
      %v2018 = vtanh.pop %v1833
      %v2019 = vtanh.pop %v1836
      %v2020 = vtanh.pop %v1839
      %v2021 = vtanh.pop %v1842
      %v2022 = vtanh.pop %v1845
      %v2023 = vtanh.pop %v1848
      %v2024 = vtanh.pop %v1851
      %v2025 = vtanh.pop %v1854
      %v2026 = vtanh.pop %v1857
      %v2027 = vtanh.pop %v1860
      %v2028 = vtanh.pop %v1863
      %v2029 = vtanh.pop %v1866
      %v2030 = vtanh.pop %v1869
      %v2031 = vtanh.pop %v1872
      %v2032 = vtanh.pop %v1875
      %v2033 = vtanh.pop %v1878
      %v2034 = vtanh.pop %v1881
      %v2035 = vtanh.pop %v1884
      %v2036 = vtanh.pop %v1887
      %v2037 = vtanh.pop %v1890
      %v2038 = vtanh.pop %v1893
      %v2039 = vtanh.pop %v1896
      %v2040 = vtanh.pop %v1899
      %v2041 = vtanh.pop %v1902
      %v2042 = vtanh.pop %v1905
      %v2043 = vtanh.pop %v1908
      %v2044 = vtanh.pop %v1911
      %v2045 = vtanh.pop %v1914
      %v2046 = vtanh.pop %v1917
      %v2047 = vld [vmem:[%s5] sm:$0xff]
      %v2048 = vld [vmem:[%s5 + $0x8] sm:$0xff]
      %v2049 = vld [vmem:[%s5 + $0x10] sm:$0xff]
      %v2050 = vld [vmem:[%s5 + $0x18] sm:$0xff]
      %v2051 = vld [vmem:[%s5 + $0x20] sm:$0xff]
      %v2052 = vld [vmem:[%s5 + $0x28] sm:$0xff]
      %v2053 = vld [vmem:[%s5 + $0x30] sm:$0xff]
      %v2054 = vld [vmem:[%s5 + $0x38] sm:$0xff]
      %v2055 = vld [vmem:[%s5 + $0x40] sm:$0xff]
      %v2056 = vld [vmem:[%s5 + $0x48] sm:$0xff]
      %v2057 = vld [vmem:[%s5 + $0x50] sm:$0xff]
      %v2058 = vld [vmem:[%s5 + $0x58] sm:$0xff]
      %v2059 = vld [vmem:[%s5 + $0x60] sm:$0xff]
      %v2060 = vld [vmem:[%s5 + $0x68] sm:$0xff]
      %v2061 = vld [vmem:[%s5 + $0x70] sm:$0xff]
      %v2062 = vld [vmem:[%s5 + $0x78] sm:$0xff]
      %v2063 = vld [vmem:[%s6] sm:$0x1]
      %v2065 = vperm.slane %v2063, 0
      %2067 = vmatpush.msra.mxu0 %v2062
      %2068 = vmatpush.msra.mxu0 %v2061
      %2069 = vmatpush.msra.mxu0 %v2060
      %2070 = vmatpush.msra.mxu0 %v2059
      %2071 = vmatpush.msra.mxu0 %v2058
      %2072 = vmatpush.msra.mxu0 %v2057
      %2073 = vmatpush.msra.mxu0 %v2056
      %2074 = vmatpush.msra.mxu0 %v2055
      %2075 = vmatpush.msra.mxu0 %v2054
      %2076 = vmatpush.msra.mxu0 %v2053
      %2077 = vmatpush.msra.mxu0 %v2052
      %2078 = vmatpush.msra.mxu0 %v2051
      %2079 = vmatpush.msra.mxu0 %v2050
      %2080 = vmatpush.msra.mxu0 %v2049
      %2081 = vmatpush.msra.mxu0 %v2048
      %2082 = vmatpush.msra.mxu0 %v2047
      %2083 = vmatmul.f32.gmra.mxu0 %v1919
      %v2084 = vpop.f32.mrf.mxu0
      %v2085 = vadd.f32 %v2065, %v2084
      %2086 = vmatmul.f32.gmra.mxu0 %v1920
      %v2087 = vpop.f32.mrf.mxu0
      %v2088 = vadd.f32 %v2065, %v2087
      %2089 = vmatmul.f32.gmra.mxu0 %v1921
      %v2090 = vpop.f32.mrf.mxu0
      %v2091 = vadd.f32 %v2065, %v2090
      %2092 = vmatmul.f32.gmra.mxu0 %v1922
      %v2093 = vpop.f32.mrf.mxu0
      %v2094 = vadd.f32 %v2065, %v2093
      %2095 = vmatmul.f32.gmra.mxu0 %v1923
      %v2096 = vpop.f32.mrf.mxu0
      %v2097 = vadd.f32 %v2065, %v2096
      %2098 = vmatmul.f32.gmra.mxu0 %v1924
      %v2099 = vpop.f32.mrf.mxu0
      %v2100 = vadd.f32 %v2065, %v2099
      %2101 = vmatmul.f32.gmra.mxu0 %v1925
      %v2102 = vpop.f32.mrf.mxu0
      %v2103 = vadd.f32 %v2065, %v2102
      %2104 = vmatmul.f32.gmra.mxu0 %v1926
      %v2105 = vpop.f32.mrf.mxu0
      %v2106 = vadd.f32 %v2065, %v2105
      %2107 = vmatmul.f32.gmra.mxu0 %v1927
      %v2108 = vpop.f32.mrf.mxu0
      %v2109 = vadd.f32 %v2065, %v2108
      %2110 = vmatmul.f32.gmra.mxu0 %v1928
      %v2111 = vpop.f32.mrf.mxu0
      %v2112 = vadd.f32 %v2065, %v2111
      %2113 = vmatmul.f32.gmra.mxu0 %v1929
      %v2114 = vpop.f32.mrf.mxu0
      %v2115 = vadd.f32 %v2065, %v2114
      %2116 = vmatmul.f32.gmra.mxu0 %v1930
      %v2117 = vpop.f32.mrf.mxu0
      %v2118 = vadd.f32 %v2065, %v2117
      %2119 = vmatmul.f32.gmra.mxu0 %v1931
      %v2120 = vpop.f32.mrf.mxu0
      %v2121 = vadd.f32 %v2065, %v2120
      %2122 = vmatmul.f32.gmra.mxu0 %v1932
      %v2123 = vpop.f32.mrf.mxu0
      %v2124 = vadd.f32 %v2065, %v2123
      %2125 = vmatmul.f32.gmra.mxu0 %v1933
      %v2126 = vpop.f32.mrf.mxu0
      %v2127 = vadd.f32 %v2065, %v2126
      %2128 = vmatmul.f32.gmra.mxu0 %v1934
      %v2129 = vpop.f32.mrf.mxu0
      %v2130 = vadd.f32 %v2065, %v2129
      %2131 = vmatmul.f32.gmra.mxu0 %v1935
      %v2132 = vpop.f32.mrf.mxu0
      %v2133 = vadd.f32 %v2065, %v2132
      %2134 = vmatmul.f32.gmra.mxu0 %v1936
      %v2135 = vpop.f32.mrf.mxu0
      %v2136 = vadd.f32 %v2065, %v2135
      %2137 = vmatmul.f32.gmra.mxu0 %v1937
      %v2138 = vpop.f32.mrf.mxu0
      %v2139 = vadd.f32 %v2065, %v2138
      %2140 = vmatmul.f32.gmra.mxu0 %v1938
      %v2141 = vpop.f32.mrf.mxu0
      %v2142 = vadd.f32 %v2065, %v2141
      %2143 = vmatmul.f32.gmra.mxu0 %v1939
      %v2144 = vpop.f32.mrf.mxu0
      %v2145 = vadd.f32 %v2065, %v2144
      %2146 = vmatmul.f32.gmra.mxu0 %v1940
      %v2147 = vpop.f32.mrf.mxu0
      %v2148 = vadd.f32 %v2065, %v2147
      %2149 = vmatmul.f32.gmra.mxu0 %v1941
      %v2150 = vpop.f32.mrf.mxu0
      %v2151 = vadd.f32 %v2065, %v2150
      %2152 = vmatmul.f32.gmra.mxu0 %v1942
      %v2153 = vpop.f32.mrf.mxu0
      %v2154 = vadd.f32 %v2065, %v2153
      %2155 = vmatmul.f32.gmra.mxu0 %v1943
      %v2156 = vpop.f32.mrf.mxu0
      %v2157 = vadd.f32 %v2065, %v2156
      %2158 = vmatmul.f32.gmra.mxu0 %v1944
      %v2159 = vpop.f32.mrf.mxu0
      %v2160 = vadd.f32 %v2065, %v2159
      %2161 = vmatmul.f32.gmra.mxu0 %v1945
      %v2162 = vpop.f32.mrf.mxu0
      %v2163 = vadd.f32 %v2065, %v2162
      %2164 = vmatmul.f32.gmra.mxu0 %v1946
      %v2165 = vpop.f32.mrf.mxu0
      %v2166 = vadd.f32 %v2065, %v2165
      %2167 = vmatmul.f32.gmra.mxu0 %v1947
      %v2168 = vpop.f32.mrf.mxu0
      %v2169 = vadd.f32 %v2065, %v2168
      %2170 = vmatmul.f32.gmra.mxu0 %v1948
      %v2171 = vpop.f32.mrf.mxu0
      %v2172 = vadd.f32 %v2065, %v2171
      %2173 = vmatmul.f32.gmra.mxu0 %v1949
      %v2174 = vpop.f32.mrf.mxu0
      %v2175 = vadd.f32 %v2065, %v2174
      %2176 = vmatmul.f32.gmra.mxu0 %v1950
      %v2177 = vpop.f32.mrf.mxu0
      %v2178 = vadd.f32 %v2065, %v2177
      %2179 = vmatmul.f32.gmra.mxu0 %v1951
      %v2180 = vpop.f32.mrf.mxu0
      %v2181 = vadd.f32 %v2065, %v2180
      %2182 = vmatmul.f32.gmra.mxu0 %v1952
      %v2183 = vpop.f32.mrf.mxu0
      %v2184 = vadd.f32 %v2065, %v2183
      %2185 = vmatmul.f32.gmra.mxu0 %v1953
      %v2186 = vpop.f32.mrf.mxu0
      %v2187 = vadd.f32 %v2065, %v2186
      %2188 = vmatmul.f32.gmra.mxu0 %v1954
      %v2189 = vpop.f32.mrf.mxu0
      %v2190 = vadd.f32 %v2065, %v2189
      %2191 = vmatmul.f32.gmra.mxu0 %v1955
      %v2192 = vpop.f32.mrf.mxu0
      %v2193 = vadd.f32 %v2065, %v2192
      %2194 = vmatmul.f32.gmra.mxu0 %v1956
      %v2195 = vpop.f32.mrf.mxu0
      %v2196 = vadd.f32 %v2065, %v2195
      %2197 = vmatmul.f32.gmra.mxu0 %v1957
      %v2198 = vpop.f32.mrf.mxu0
      %v2199 = vadd.f32 %v2065, %v2198
      %2200 = vmatmul.f32.gmra.mxu0 %v1958
      %v2201 = vpop.f32.mrf.mxu0
      %v2202 = vadd.f32 %v2065, %v2201
      %2203 = vmatmul.f32.gmra.mxu0 %v1959
      %v2204 = vpop.f32.mrf.mxu0
      %v2205 = vadd.f32 %v2065, %v2204
      %2206 = vmatmul.f32.gmra.mxu0 %v1960
      %v2207 = vpop.f32.mrf.mxu0
      %v2208 = vadd.f32 %v2065, %v2207
      %2209 = vmatmul.f32.gmra.mxu0 %v1961
      %v2210 = vpop.f32.mrf.mxu0
      %v2211 = vadd.f32 %v2065, %v2210
      %2212 = vmatmul.f32.gmra.mxu0 %v1962
      %v2213 = vpop.f32.mrf.mxu0
      %v2214 = vadd.f32 %v2065, %v2213
      %2215 = vmatmul.f32.gmra.mxu0 %v1963
      %v2216 = vpop.f32.mrf.mxu0
      %v2217 = vadd.f32 %v2065, %v2216
      %2218 = vmatmul.f32.gmra.mxu0 %v1964
      %v2219 = vpop.f32.mrf.mxu0
      %v2220 = vadd.f32 %v2065, %v2219
      %2221 = vmatmul.f32.gmra.mxu0 %v1965
      %v2222 = vpop.f32.mrf.mxu0
      %v2223 = vadd.f32 %v2065, %v2222
      %2224 = vmatmul.f32.gmra.mxu0 %v1966
      %v2225 = vpop.f32.mrf.mxu0
      %v2226 = vadd.f32 %v2065, %v2225
      %2227 = vmatmul.f32.gmra.mxu0 %v1967
      %v2228 = vpop.f32.mrf.mxu0
      %v2229 = vadd.f32 %v2065, %v2228
      %2230 = vmatmul.f32.gmra.mxu0 %v1968
      %v2231 = vpop.f32.mrf.mxu0
      %v2232 = vadd.f32 %v2065, %v2231
      %2233 = vmatmul.f32.gmra.mxu0 %v1969
      %v2234 = vpop.f32.mrf.mxu0
      %v2235 = vadd.f32 %v2065, %v2234
      %2236 = vmatmul.f32.gmra.mxu0 %v1970
      %v2237 = vpop.f32.mrf.mxu0
      %v2238 = vadd.f32 %v2065, %v2237
      %2239 = vmatmul.f32.gmra.mxu0 %v1971
      %v2240 = vpop.f32.mrf.mxu0
      %v2241 = vadd.f32 %v2065, %v2240
      %2242 = vmatmul.f32.gmra.mxu0 %v1972
      %v2243 = vpop.f32.mrf.mxu0
      %v2244 = vadd.f32 %v2065, %v2243
      %2245 = vmatmul.f32.gmra.mxu0 %v1973
      %v2246 = vpop.f32.mrf.mxu0
      %v2247 = vadd.f32 %v2065, %v2246
      %2248 = vmatmul.f32.gmra.mxu0 %v1974
      %v2249 = vpop.f32.mrf.mxu0
      %v2250 = vadd.f32 %v2065, %v2249
      %2251 = vmatmul.f32.gmra.mxu0 %v1975
      %v2252 = vpop.f32.mrf.mxu0
      %v2253 = vadd.f32 %v2065, %v2252
      %2254 = vmatmul.f32.gmra.mxu0 %v1976
      %v2255 = vpop.f32.mrf.mxu0
      %v2256 = vadd.f32 %v2065, %v2255
      %2257 = vmatmul.f32.gmra.mxu0 %v1977
      %v2258 = vpop.f32.mrf.mxu0
      %v2259 = vadd.f32 %v2065, %v2258
      %2260 = vmatmul.f32.gmra.mxu0 %v1978
      %v2261 = vpop.f32.mrf.mxu0
      %v2262 = vadd.f32 %v2065, %v2261
      %2263 = vmatmul.f32.gmra.mxu0 %v1979
      %v2264 = vpop.f32.mrf.mxu0
      %v2265 = vadd.f32 %v2065, %v2264
      %2266 = vmatmul.f32.gmra.mxu0 %v1980
      %v2267 = vpop.f32.mrf.mxu0
      %v2268 = vadd.f32 %v2065, %v2267
      %2269 = vmatmul.f32.gmra.mxu0 %v1981
      %v2270 = vpop.f32.mrf.mxu0
      %v2271 = vadd.f32 %v2065, %v2270
      %2272 = vmatmul.f32.gmra.mxu0 %v1982
      %v2273 = vpop.f32.mrf.mxu0
      %v2274 = vadd.f32 %v2065, %v2273
      %2275 = vmatmul.f32.gmra.mxu0 %v1983
      %v2276 = vpop.f32.mrf.mxu0
      %v2277 = vadd.f32 %v2065, %v2276
      %2278 = vmatmul.f32.gmra.mxu0 %v1984
      %v2279 = vpop.f32.mrf.mxu0
      %v2280 = vadd.f32 %v2065, %v2279
      %2281 = vmatmul.f32.gmra.mxu0 %v1985
      %v2282 = vpop.f32.mrf.mxu0
      %v2283 = vadd.f32 %v2065, %v2282
      %2284 = vmatmul.f32.gmra.mxu0 %v1986
      %v2285 = vpop.f32.mrf.mxu0
      %v2286 = vadd.f32 %v2065, %v2285
      %2287 = vmatmul.f32.gmra.mxu0 %v1987
      %v2288 = vpop.f32.mrf.mxu0
      %v2289 = vadd.f32 %v2065, %v2288
      %2290 = vmatmul.f32.gmra.mxu0 %v1988
      %v2291 = vpop.f32.mrf.mxu0
      %v2292 = vadd.f32 %v2065, %v2291
      %2293 = vmatmul.f32.gmra.mxu0 %v1989
      %v2294 = vpop.f32.mrf.mxu0
      %v2295 = vadd.f32 %v2065, %v2294
      %2296 = vmatmul.f32.gmra.mxu0 %v1990
      %v2297 = vpop.f32.mrf.mxu0
      %v2298 = vadd.f32 %v2065, %v2297
      %2299 = vmatmul.f32.gmra.mxu0 %v1991
      %v2300 = vpop.f32.mrf.mxu0
      %v2301 = vadd.f32 %v2065, %v2300
      %2302 = vmatmul.f32.gmra.mxu0 %v1992
      %v2303 = vpop.f32.mrf.mxu0
      %v2304 = vadd.f32 %v2065, %v2303
      %2305 = vmatmul.f32.gmra.mxu0 %v1993
      %v2306 = vpop.f32.mrf.mxu0
      %v2307 = vadd.f32 %v2065, %v2306
      %2308 = vmatmul.f32.gmra.mxu0 %v1994
      %v2309 = vpop.f32.mrf.mxu0
      %v2310 = vadd.f32 %v2065, %v2309
      %2311 = vmatmul.f32.gmra.mxu0 %v1995
      %v2312 = vpop.f32.mrf.mxu0
      %v2313 = vadd.f32 %v2065, %v2312
      %2314 = vmatmul.f32.gmra.mxu0 %v1996
      %v2315 = vpop.f32.mrf.mxu0
      %v2316 = vadd.f32 %v2065, %v2315
      %2317 = vmatmul.f32.gmra.mxu0 %v1997
      %v2318 = vpop.f32.mrf.mxu0
      %v2319 = vadd.f32 %v2065, %v2318
      %2320 = vmatmul.f32.gmra.mxu0 %v1998
      %v2321 = vpop.f32.mrf.mxu0
      %v2322 = vadd.f32 %v2065, %v2321
      %2323 = vmatmul.f32.gmra.mxu0 %v1999
      %v2324 = vpop.f32.mrf.mxu0
      %v2325 = vadd.f32 %v2065, %v2324
      %2326 = vmatmul.f32.gmra.mxu0 %v2000
      %v2327 = vpop.f32.mrf.mxu0
      %v2328 = vadd.f32 %v2065, %v2327
      %2329 = vmatmul.f32.gmra.mxu0 %v2001
      %v2330 = vpop.f32.mrf.mxu0
      %v2331 = vadd.f32 %v2065, %v2330
      %2332 = vmatmul.f32.gmra.mxu0 %v2002
      %v2333 = vpop.f32.mrf.mxu0
      %v2334 = vadd.f32 %v2065, %v2333
      %2335 = vmatmul.f32.gmra.mxu0 %v2003
      %v2336 = vpop.f32.mrf.mxu0
      %v2337 = vadd.f32 %v2065, %v2336
      %2338 = vmatmul.f32.gmra.mxu0 %v2004
      %v2339 = vpop.f32.mrf.mxu0
      %v2340 = vadd.f32 %v2065, %v2339
      %2341 = vmatmul.f32.gmra.mxu0 %v2005
      %v2342 = vpop.f32.mrf.mxu0
      %v2343 = vadd.f32 %v2065, %v2342
      %2344 = vmatmul.f32.gmra.mxu0 %v2006
      %v2345 = vpop.f32.mrf.mxu0
      %v2346 = vadd.f32 %v2065, %v2345
      %2347 = vmatmul.f32.gmra.mxu0 %v2007
      %v2348 = vpop.f32.mrf.mxu0
      %v2349 = vadd.f32 %v2065, %v2348
      %2350 = vmatmul.f32.gmra.mxu0 %v2008
      %v2351 = vpop.f32.mrf.mxu0
      %v2352 = vadd.f32 %v2065, %v2351
      %2353 = vmatmul.f32.gmra.mxu0 %v2009
      %v2354 = vpop.f32.mrf.mxu0
      %v2355 = vadd.f32 %v2065, %v2354
      %2356 = vmatmul.f32.gmra.mxu0 %v2010
      %v2357 = vpop.f32.mrf.mxu0
      %v2358 = vadd.f32 %v2065, %v2357
      %2359 = vmatmul.f32.gmra.mxu0 %v2011
      %v2360 = vpop.f32.mrf.mxu0
      %v2361 = vadd.f32 %v2065, %v2360
      %2362 = vmatmul.f32.gmra.mxu0 %v2012
      %v2363 = vpop.f32.mrf.mxu0
      %v2364 = vadd.f32 %v2065, %v2363
      %2365 = vmatmul.f32.gmra.mxu0 %v2013
      %v2366 = vpop.f32.mrf.mxu0
      %v2367 = vadd.f32 %v2065, %v2366
      %2368 = vmatmul.f32.gmra.mxu0 %v2014
      %v2369 = vpop.f32.mrf.mxu0
      %v2370 = vadd.f32 %v2065, %v2369
      %2371 = vmatmul.f32.gmra.mxu0 %v2015
      %v2372 = vpop.f32.mrf.mxu0
      %v2373 = vadd.f32 %v2065, %v2372
      %2374 = vmatmul.f32.gmra.mxu0 %v2016
      %v2375 = vpop.f32.mrf.mxu0
      %v2376 = vadd.f32 %v2065, %v2375
      %2377 = vmatmul.f32.gmra.mxu0 %v2017
      %v2378 = vpop.f32.mrf.mxu0
      %v2379 = vadd.f32 %v2065, %v2378
      %2380 = vmatmul.f32.gmra.mxu0 %v2018
      %v2381 = vpop.f32.mrf.mxu0
      %v2382 = vadd.f32 %v2065, %v2381
      %2383 = vmatmul.f32.gmra.mxu0 %v2019
      %v2384 = vpop.f32.mrf.mxu0
      %v2385 = vadd.f32 %v2065, %v2384
      %2386 = vmatmul.f32.gmra.mxu0 %v2020
      %v2387 = vpop.f32.mrf.mxu0
      %v2388 = vadd.f32 %v2065, %v2387
      %2389 = vmatmul.f32.gmra.mxu0 %v2021
      %v2390 = vpop.f32.mrf.mxu0
      %v2391 = vadd.f32 %v2065, %v2390
      %2392 = vmatmul.f32.gmra.mxu0 %v2022
      %v2393 = vpop.f32.mrf.mxu0
      %v2394 = vadd.f32 %v2065, %v2393
      %2395 = vmatmul.f32.gmra.mxu0 %v2023
      %v2396 = vpop.f32.mrf.mxu0
      %v2397 = vadd.f32 %v2065, %v2396
      %2398 = vmatmul.f32.gmra.mxu0 %v2024
      %v2399 = vpop.f32.mrf.mxu0
      %v2400 = vadd.f32 %v2065, %v2399
      %2401 = vmatmul.f32.gmra.mxu0 %v2025
      %v2402 = vpop.f32.mrf.mxu0
      %v2403 = vadd.f32 %v2065, %v2402
      %2404 = vmatmul.f32.gmra.mxu0 %v2026
      %v2405 = vpop.f32.mrf.mxu0
      %v2406 = vadd.f32 %v2065, %v2405
      %2407 = vmatmul.f32.gmra.mxu0 %v2027
      %v2408 = vpop.f32.mrf.mxu0
      %v2409 = vadd.f32 %v2065, %v2408
      %2410 = vmatmul.f32.gmra.mxu0 %v2028
      %v2411 = vpop.f32.mrf.mxu0
      %v2412 = vadd.f32 %v2065, %v2411
      %2413 = vmatmul.f32.gmra.mxu0 %v2029
      %v2414 = vpop.f32.mrf.mxu0
      %v2415 = vadd.f32 %v2065, %v2414
      %2416 = vmatmul.f32.gmra.mxu0 %v2030
      %v2417 = vpop.f32.mrf.mxu0
      %v2418 = vadd.f32 %v2065, %v2417
      %2419 = vmatmul.f32.gmra.mxu0 %v2031
      %v2420 = vpop.f32.mrf.mxu0
      %v2421 = vadd.f32 %v2065, %v2420
      %2422 = vmatmul.f32.gmra.mxu0 %v2032
      %v2423 = vpop.f32.mrf.mxu0
      %v2424 = vadd.f32 %v2065, %v2423
      %2425 = vmatmul.f32.gmra.mxu0 %v2033
      %v2426 = vpop.f32.mrf.mxu0
      %v2427 = vadd.f32 %v2065, %v2426
      %2428 = vmatmul.f32.gmra.mxu0 %v2034
      %v2429 = vpop.f32.mrf.mxu0
      %v2430 = vadd.f32 %v2065, %v2429
      %2431 = vmatmul.f32.gmra.mxu0 %v2035
      %v2432 = vpop.f32.mrf.mxu0
      %v2433 = vadd.f32 %v2065, %v2432
      %2434 = vmatmul.f32.gmra.mxu0 %v2036
      %v2435 = vpop.f32.mrf.mxu0
      %v2436 = vadd.f32 %v2065, %v2435
      %2437 = vmatmul.f32.gmra.mxu0 %v2037
      %v2438 = vpop.f32.mrf.mxu0
      %v2439 = vadd.f32 %v2065, %v2438
      %2440 = vmatmul.f32.gmra.mxu0 %v2038
      %v2441 = vpop.f32.mrf.mxu0
      %v2442 = vadd.f32 %v2065, %v2441
      %2443 = vmatmul.f32.gmra.mxu0 %v2039
      %v2444 = vpop.f32.mrf.mxu0
      %v2445 = vadd.f32 %v2065, %v2444
      %2446 = vmatmul.f32.gmra.mxu0 %v2040
      %v2447 = vpop.f32.mrf.mxu0
      %v2448 = vadd.f32 %v2065, %v2447
      %2449 = vmatmul.f32.gmra.mxu0 %v2041
      %v2450 = vpop.f32.mrf.mxu0
      %v2451 = vadd.f32 %v2065, %v2450
      %2452 = vmatmul.f32.gmra.mxu0 %v2042
      %v2453 = vpop.f32.mrf.mxu0
      %v2454 = vadd.f32 %v2065, %v2453
      %2455 = vmatmul.f32.gmra.mxu0 %v2043
      %v2456 = vpop.f32.mrf.mxu0
      %v2457 = vadd.f32 %v2065, %v2456
      %2458 = vmatmul.f32.gmra.mxu0 %v2044
      %v2459 = vpop.f32.mrf.mxu0
      %v2460 = vadd.f32 %v2065, %v2459
      %2461 = vmatmul.f32.gmra.mxu0 %v2045
      %v2462 = vpop.f32.mrf.mxu0
      %v2463 = vadd.f32 %v2065, %v2462
      %2464 = vmatmul.f32.gmra.mxu0 %v2046
      %v2465 = vpop.f32.mrf.mxu0
      %v2466 = vadd.f32 %v2065, %v2465
      %2467 = vdwg.mxu0
      %v2468 = vtanh.pop %v2085
      %v2469 = vtanh.pop %v2088
      %v2470 = vtanh.pop %v2091
      %v2471 = vtanh.pop %v2094
      %v2472 = vtanh.pop %v2097
      %v2473 = vtanh.pop %v2100
      %v2474 = vtanh.pop %v2103
      %v2475 = vtanh.pop %v2106
      %v2476 = vtanh.pop %v2109
      %v2477 = vtanh.pop %v2112
      %v2478 = vtanh.pop %v2115
      %v2479 = vtanh.pop %v2118
      %v2480 = vtanh.pop %v2121
      %v2481 = vtanh.pop %v2124
      %v2482 = vtanh.pop %v2127
      %v2483 = vtanh.pop %v2130
      %v2484 = vtanh.pop %v2133
      %v2485 = vtanh.pop %v2136
      %v2486 = vtanh.pop %v2139
      %v2487 = vtanh.pop %v2142
      %v2488 = vtanh.pop %v2145
      %v2489 = vtanh.pop %v2148
      %v2490 = vtanh.pop %v2151
      %v2491 = vtanh.pop %v2154
      %v2492 = vtanh.pop %v2157
      %v2493 = vtanh.pop %v2160
      %v2494 = vtanh.pop %v2163
      %v2495 = vtanh.pop %v2166
      %v2496 = vtanh.pop %v2169
      %v2497 = vtanh.pop %v2172
      %v2498 = vtanh.pop %v2175
      %v2499 = vtanh.pop %v2178
      %v2500 = vtanh.pop %v2181
      %v2501 = vtanh.pop %v2184
      %v2502 = vtanh.pop %v2187
      %v2503 = vtanh.pop %v2190
      %v2504 = vtanh.pop %v2193
      %v2505 = vtanh.pop %v2196
      %v2506 = vtanh.pop %v2199
      %v2507 = vtanh.pop %v2202
      %v2508 = vtanh.pop %v2205
      %v2509 = vtanh.pop %v2208
      %v2510 = vtanh.pop %v2211
      %v2511 = vtanh.pop %v2214
      %v2512 = vtanh.pop %v2217
      %v2513 = vtanh.pop %v2220
      %v2514 = vtanh.pop %v2223
      %v2515 = vtanh.pop %v2226
      %v2516 = vtanh.pop %v2229
      %v2517 = vtanh.pop %v2232
      %v2518 = vtanh.pop %v2235
      %v2519 = vtanh.pop %v2238
      %v2520 = vtanh.pop %v2241
      %v2521 = vtanh.pop %v2244
      %v2522 = vtanh.pop %v2247
      %v2523 = vtanh.pop %v2250
      %v2524 = vtanh.pop %v2253
      %v2525 = vtanh.pop %v2256
      %v2526 = vtanh.pop %v2259
      %v2527 = vtanh.pop %v2262
      %v2528 = vtanh.pop %v2265
      %v2529 = vtanh.pop %v2268
      %v2530 = vtanh.pop %v2271
      %v2531 = vtanh.pop %v2274
      %v2532 = vtanh.pop %v2277
      %v2533 = vtanh.pop %v2280
      %v2534 = vtanh.pop %v2283
      %v2535 = vtanh.pop %v2286
      %v2536 = vtanh.pop %v2289
      %v2537 = vtanh.pop %v2292
      %v2538 = vtanh.pop %v2295
      %v2539 = vtanh.pop %v2298
      %v2540 = vtanh.pop %v2301
      %v2541 = vtanh.pop %v2304
      %v2542 = vtanh.pop %v2307
      %v2543 = vtanh.pop %v2310
      %v2544 = vtanh.pop %v2313
      %v2545 = vtanh.pop %v2316
      %v2546 = vtanh.pop %v2319
      %v2547 = vtanh.pop %v2322
      %v2548 = vtanh.pop %v2325
      %v2549 = vtanh.pop %v2328
      %v2550 = vtanh.pop %v2331
      %v2551 = vtanh.pop %v2334
      %v2552 = vtanh.pop %v2337
      %v2553 = vtanh.pop %v2340
      %v2554 = vtanh.pop %v2343
      %v2555 = vtanh.pop %v2346
      %v2556 = vtanh.pop %v2349
      %v2557 = vtanh.pop %v2352
      %v2558 = vtanh.pop %v2355
      %v2559 = vtanh.pop %v2358
      %v2560 = vtanh.pop %v2361
      %v2561 = vtanh.pop %v2364
      %v2562 = vtanh.pop %v2367
      %v2563 = vtanh.pop %v2370
      %v2564 = vtanh.pop %v2373
      %v2565 = vtanh.pop %v2376
      %v2566 = vtanh.pop %v2379
      %v2567 = vtanh.pop %v2382
      %v2568 = vtanh.pop %v2385
      %v2569 = vtanh.pop %v2388
      %v2570 = vtanh.pop %v2391
      %v2571 = vtanh.pop %v2394
      %v2572 = vtanh.pop %v2397
      %v2573 = vtanh.pop %v2400
      %v2574 = vtanh.pop %v2403
      %v2575 = vtanh.pop %v2406
      %v2576 = vtanh.pop %v2409
      %v2577 = vtanh.pop %v2412
      %v2578 = vtanh.pop %v2415
      %v2579 = vtanh.pop %v2418
      %v2580 = vtanh.pop %v2421
      %v2581 = vtanh.pop %v2424
      %v2582 = vtanh.pop %v2427
      %v2583 = vtanh.pop %v2430
      %v2584 = vtanh.pop %v2433
      %v2585 = vtanh.pop %v2436
      %v2586 = vtanh.pop %v2439
      %v2587 = vtanh.pop %v2442
      %v2588 = vtanh.pop %v2445
      %v2589 = vtanh.pop %v2448
      %v2590 = vtanh.pop %v2451
      %v2591 = vtanh.pop %v2454
      %v2592 = vtanh.pop %v2457
      %v2593 = vtanh.pop %v2460
      %v2594 = vtanh.pop %v2463
      %v2595 = vtanh.pop %v2466
      %v2596 = vld [vmem:[%s7] sm:$0xff]
      %v2597 = vld [vmem:[%s7 + $0x8] sm:$0xff]
      %v2598 = vld [vmem:[%s7 + $0x10] sm:$0xff]
      %v2599 = vld [vmem:[%s7 + $0x18] sm:$0xff]
      %v2600 = vld [vmem:[%s7 + $0x20] sm:$0xff]
      %v2601 = vld [vmem:[%s7 + $0x28] sm:$0xff]
      %v2602 = vld [vmem:[%s7 + $0x30] sm:$0xff]
      %v2603 = vld [vmem:[%s7 + $0x38] sm:$0xff]
      %v2604 = vld [vmem:[%s7 + $0x40] sm:$0xff]
      %v2605 = vld [vmem:[%s7 + $0x48] sm:$0xff]
      %v2606 = vld [vmem:[%s7 + $0x50] sm:$0xff]
      %v2607 = vld [vmem:[%s7 + $0x58] sm:$0xff]
      %v2608 = vld [vmem:[%s7 + $0x60] sm:$0xff]
      %v2609 = vld [vmem:[%s7 + $0x68] sm:$0xff]
      %v2610 = vld [vmem:[%s7 + $0x70] sm:$0xff]
      %v2611 = vld [vmem:[%s7 + $0x78] sm:$0xff]
      %v2612 = vld [vmem:[#allocation2] sm:$0x1]
      %v2614 = vperm.slane %v2612, 0
      %2616 = vmatpush.msra.mxu0 %v2611
      %2617 = vmatpush.msra.mxu0 %v2610
      %2618 = vmatpush.msra.mxu0 %v2609
      %2619 = vmatpush.msra.mxu0 %v2608
      %2620 = vmatpush.msra.mxu0 %v2607
      %2621 = vmatpush.msra.mxu0 %v2606
      %2622 = vmatpush.msra.mxu0 %v2605
      %2623 = vmatpush.msra.mxu0 %v2604
      %2624 = vmatpush.msra.mxu0 %v2603
      %2625 = vmatpush.msra.mxu0 %v2602
      %2626 = vmatpush.msra.mxu0 %v2601
      %2627 = vmatpush.msra.mxu0 %v2600
      %2628 = vmatpush.msra.mxu0 %v2599
      %2629 = vmatpush.msra.mxu0 %v2598
      %2630 = vmatpush.msra.mxu0 %v2597
      %2631 = vmatpush.msra.mxu0 %v2596
      %2632 = vmatmul.f32.gmra.mxu0 %v2468
      %v2633 = vpop.f32.mrf.mxu0
      %v2634 = vadd.f32 %v2614, %v2633
      %2635 = vmatmul.f32.gmra.mxu0 %v2469
      %v2636 = vpop.f32.mrf.mxu0
      %v2637 = vadd.f32 %v2614, %v2636
      %2638 = vmatmul.f32.gmra.mxu0 %v2470
      %v2639 = vpop.f32.mrf.mxu0
      %v2640 = vadd.f32 %v2614, %v2639
      %2641 = vmatmul.f32.gmra.mxu0 %v2471
      %v2642 = vpop.f32.mrf.mxu0
      %v2643 = vadd.f32 %v2614, %v2642
      %2644 = vmatmul.f32.gmra.mxu0 %v2472
      %v2645 = vpop.f32.mrf.mxu0
      %v2646 = vadd.f32 %v2614, %v2645
      %2647 = vmatmul.f32.gmra.mxu0 %v2473
      %v2648 = vpop.f32.mrf.mxu0
      %v2649 = vadd.f32 %v2614, %v2648
      %2650 = vmatmul.f32.gmra.mxu0 %v2474
      %v2651 = vpop.f32.mrf.mxu0
      %v2652 = vadd.f32 %v2614, %v2651
      %2653 = vmatmul.f32.gmra.mxu0 %v2475
      %v2654 = vpop.f32.mrf.mxu0
      %v2655 = vadd.f32 %v2614, %v2654
      %2656 = vmatmul.f32.gmra.mxu0 %v2476
      %v2657 = vpop.f32.mrf.mxu0
      %v2658 = vadd.f32 %v2614, %v2657
      %2659 = vmatmul.f32.gmra.mxu0 %v2477
      %v2660 = vpop.f32.mrf.mxu0
      %v2661 = vadd.f32 %v2614, %v2660
      %2662 = vmatmul.f32.gmra.mxu0 %v2478
      %v2663 = vpop.f32.mrf.mxu0
      %v2664 = vadd.f32 %v2614, %v2663
      %2665 = vmatmul.f32.gmra.mxu0 %v2479
      %v2666 = vpop.f32.mrf.mxu0
      %v2667 = vadd.f32 %v2614, %v2666
      %2668 = vmatmul.f32.gmra.mxu0 %v2480
      %v2669 = vpop.f32.mrf.mxu0
      %v2670 = vadd.f32 %v2614, %v2669
      %2671 = vmatmul.f32.gmra.mxu0 %v2481
      %v2672 = vpop.f32.mrf.mxu0
      %v2673 = vadd.f32 %v2614, %v2672
      %2674 = vmatmul.f32.gmra.mxu0 %v2482
      %v2675 = vpop.f32.mrf.mxu0
      %v2676 = vadd.f32 %v2614, %v2675
      %2677 = vmatmul.f32.gmra.mxu0 %v2483
      %v2678 = vpop.f32.mrf.mxu0
      %v2679 = vadd.f32 %v2614, %v2678
      %2680 = vmatmul.f32.gmra.mxu0 %v2484
      %v2681 = vpop.f32.mrf.mxu0
      %v2682 = vadd.f32 %v2614, %v2681
      %2683 = vmatmul.f32.gmra.mxu0 %v2485
      %v2684 = vpop.f32.mrf.mxu0
      %v2685 = vadd.f32 %v2614, %v2684
      %2686 = vmatmul.f32.gmra.mxu0 %v2486
      %v2687 = vpop.f32.mrf.mxu0
      %v2688 = vadd.f32 %v2614, %v2687
      %2689 = vmatmul.f32.gmra.mxu0 %v2487
      %v2690 = vpop.f32.mrf.mxu0
      %v2691 = vadd.f32 %v2614, %v2690
      %2692 = vmatmul.f32.gmra.mxu0 %v2488
      %v2693 = vpop.f32.mrf.mxu0
      %v2694 = vadd.f32 %v2614, %v2693
      %2695 = vmatmul.f32.gmra.mxu0 %v2489
      %v2696 = vpop.f32.mrf.mxu0
      %v2697 = vadd.f32 %v2614, %v2696
      %2698 = vmatmul.f32.gmra.mxu0 %v2490
      %v2699 = vpop.f32.mrf.mxu0
      %v2700 = vadd.f32 %v2614, %v2699
      %2701 = vmatmul.f32.gmra.mxu0 %v2491
      %v2702 = vpop.f32.mrf.mxu0
      %v2703 = vadd.f32 %v2614, %v2702
      %2704 = vmatmul.f32.gmra.mxu0 %v2492
      %v2705 = vpop.f32.mrf.mxu0
      %v2706 = vadd.f32 %v2614, %v2705
      %2707 = vmatmul.f32.gmra.mxu0 %v2493
      %v2708 = vpop.f32.mrf.mxu0
      %v2709 = vadd.f32 %v2614, %v2708
      %2710 = vmatmul.f32.gmra.mxu0 %v2494
      %v2711 = vpop.f32.mrf.mxu0
      %v2712 = vadd.f32 %v2614, %v2711
      %2713 = vmatmul.f32.gmra.mxu0 %v2495
      %v2714 = vpop.f32.mrf.mxu0
      %v2715 = vadd.f32 %v2614, %v2714
      %2716 = vmatmul.f32.gmra.mxu0 %v2496
      %v2717 = vpop.f32.mrf.mxu0
      %v2718 = vadd.f32 %v2614, %v2717
      %2719 = vmatmul.f32.gmra.mxu0 %v2497
      %v2720 = vpop.f32.mrf.mxu0
      %v2721 = vadd.f32 %v2614, %v2720
      %2722 = vmatmul.f32.gmra.mxu0 %v2498
      %v2723 = vpop.f32.mrf.mxu0
      %v2724 = vadd.f32 %v2614, %v2723
      %2725 = vmatmul.f32.gmra.mxu0 %v2499
      %v2726 = vpop.f32.mrf.mxu0
      %v2727 = vadd.f32 %v2614, %v2726
      %2728 = vmatmul.f32.gmra.mxu0 %v2500
      %v2729 = vpop.f32.mrf.mxu0
      %v2730 = vadd.f32 %v2614, %v2729
      %2731 = vmatmul.f32.gmra.mxu0 %v2501
      %v2732 = vpop.f32.mrf.mxu0
      %v2733 = vadd.f32 %v2614, %v2732
      %2734 = vmatmul.f32.gmra.mxu0 %v2502
      %v2735 = vpop.f32.mrf.mxu0
      %v2736 = vadd.f32 %v2614, %v2735
      %2737 = vmatmul.f32.gmra.mxu0 %v2503
      %v2738 = vpop.f32.mrf.mxu0
      %v2739 = vadd.f32 %v2614, %v2738
      %2740 = vmatmul.f32.gmra.mxu0 %v2504
      %v2741 = vpop.f32.mrf.mxu0
      %v2742 = vadd.f32 %v2614, %v2741
      %2743 = vmatmul.f32.gmra.mxu0 %v2505
      %v2744 = vpop.f32.mrf.mxu0
      %v2745 = vadd.f32 %v2614, %v2744
      %2746 = vmatmul.f32.gmra.mxu0 %v2506
      %v2747 = vpop.f32.mrf.mxu0
      %v2748 = vadd.f32 %v2614, %v2747
      %2749 = vmatmul.f32.gmra.mxu0 %v2507
      %v2750 = vpop.f32.mrf.mxu0
      %v2751 = vadd.f32 %v2614, %v2750
      %2752 = vmatmul.f32.gmra.mxu0 %v2508
      %v2753 = vpop.f32.mrf.mxu0
      %v2754 = vadd.f32 %v2614, %v2753
      %2755 = vmatmul.f32.gmra.mxu0 %v2509
      %v2756 = vpop.f32.mrf.mxu0
      %v2757 = vadd.f32 %v2614, %v2756
      %2758 = vmatmul.f32.gmra.mxu0 %v2510
      %v2759 = vpop.f32.mrf.mxu0
      %v2760 = vadd.f32 %v2614, %v2759
      %2761 = vmatmul.f32.gmra.mxu0 %v2511
      %v2762 = vpop.f32.mrf.mxu0
      %v2763 = vadd.f32 %v2614, %v2762
      %2764 = vmatmul.f32.gmra.mxu0 %v2512
      %v2765 = vpop.f32.mrf.mxu0
      %v2766 = vadd.f32 %v2614, %v2765
      %2767 = vmatmul.f32.gmra.mxu0 %v2513
      %v2768 = vpop.f32.mrf.mxu0
      %v2769 = vadd.f32 %v2614, %v2768
      %2770 = vmatmul.f32.gmra.mxu0 %v2514
      %v2771 = vpop.f32.mrf.mxu0
      %v2772 = vadd.f32 %v2614, %v2771
      %2773 = vmatmul.f32.gmra.mxu0 %v2515
      %v2774 = vpop.f32.mrf.mxu0
      %v2775 = vadd.f32 %v2614, %v2774
      %2776 = vmatmul.f32.gmra.mxu0 %v2516
      %v2777 = vpop.f32.mrf.mxu0
      %v2778 = vadd.f32 %v2614, %v2777
      %2779 = vmatmul.f32.gmra.mxu0 %v2517
      %v2780 = vpop.f32.mrf.mxu0
      %v2781 = vadd.f32 %v2614, %v2780
      %2782 = vmatmul.f32.gmra.mxu0 %v2518
      %v2783 = vpop.f32.mrf.mxu0
      %v2784 = vadd.f32 %v2614, %v2783
      %2785 = vmatmul.f32.gmra.mxu0 %v2519
      %v2786 = vpop.f32.mrf.mxu0
      %v2787 = vadd.f32 %v2614, %v2786
      %2788 = vmatmul.f32.gmra.mxu0 %v2520
      %v2789 = vpop.f32.mrf.mxu0
      %v2790 = vadd.f32 %v2614, %v2789
      %2791 = vmatmul.f32.gmra.mxu0 %v2521
      %v2792 = vpop.f32.mrf.mxu0
      %v2793 = vadd.f32 %v2614, %v2792
      %2794 = vmatmul.f32.gmra.mxu0 %v2522
      %v2795 = vpop.f32.mrf.mxu0
      %v2796 = vadd.f32 %v2614, %v2795
      %2797 = vmatmul.f32.gmra.mxu0 %v2523
      %v2798 = vpop.f32.mrf.mxu0
      %v2799 = vadd.f32 %v2614, %v2798
      %2800 = vmatmul.f32.gmra.mxu0 %v2524
      %v2801 = vpop.f32.mrf.mxu0
      %v2802 = vadd.f32 %v2614, %v2801
      %2803 = vmatmul.f32.gmra.mxu0 %v2525
      %v2804 = vpop.f32.mrf.mxu0
      %v2805 = vadd.f32 %v2614, %v2804
      %2806 = vmatmul.f32.gmra.mxu0 %v2526
      %v2807 = vpop.f32.mrf.mxu0
      %v2808 = vadd.f32 %v2614, %v2807
      %2809 = vmatmul.f32.gmra.mxu0 %v2527
      %v2810 = vpop.f32.mrf.mxu0
      %v2811 = vadd.f32 %v2614, %v2810
      %2812 = vmatmul.f32.gmra.mxu0 %v2528
      %v2813 = vpop.f32.mrf.mxu0
      %v2814 = vadd.f32 %v2614, %v2813
      %2815 = vmatmul.f32.gmra.mxu0 %v2529
      %v2816 = vpop.f32.mrf.mxu0
      %v2817 = vadd.f32 %v2614, %v2816
      %2818 = vmatmul.f32.gmra.mxu0 %v2530
      %v2819 = vpop.f32.mrf.mxu0
      %v2820 = vadd.f32 %v2614, %v2819
      %2821 = vmatmul.f32.gmra.mxu0 %v2531
      %v2822 = vpop.f32.mrf.mxu0
      %v2823 = vadd.f32 %v2614, %v2822
      %2824 = vmatmul.f32.gmra.mxu0 %v2532
      %v2825 = vpop.f32.mrf.mxu0
      %v2826 = vadd.f32 %v2614, %v2825
      %2827 = vmatmul.f32.gmra.mxu0 %v2533
      %v2828 = vpop.f32.mrf.mxu0
      %v2829 = vadd.f32 %v2614, %v2828
      %2830 = vmatmul.f32.gmra.mxu0 %v2534
      %v2831 = vpop.f32.mrf.mxu0
      %v2832 = vadd.f32 %v2614, %v2831
      %2833 = vmatmul.f32.gmra.mxu0 %v2535
      %v2834 = vpop.f32.mrf.mxu0
      %v2835 = vadd.f32 %v2614, %v2834
      %2836 = vmatmul.f32.gmra.mxu0 %v2536
      %v2837 = vpop.f32.mrf.mxu0
      %v2838 = vadd.f32 %v2614, %v2837
      %2839 = vmatmul.f32.gmra.mxu0 %v2537
      %v2840 = vpop.f32.mrf.mxu0
      %v2841 = vadd.f32 %v2614, %v2840
      %2842 = vmatmul.f32.gmra.mxu0 %v2538
      %v2843 = vpop.f32.mrf.mxu0
      %v2844 = vadd.f32 %v2614, %v2843
      %2845 = vmatmul.f32.gmra.mxu0 %v2539
      %v2846 = vpop.f32.mrf.mxu0
      %v2847 = vadd.f32 %v2614, %v2846
      %2848 = vmatmul.f32.gmra.mxu0 %v2540
      %v2849 = vpop.f32.mrf.mxu0
      %v2850 = vadd.f32 %v2614, %v2849
      %2851 = vmatmul.f32.gmra.mxu0 %v2541
      %v2852 = vpop.f32.mrf.mxu0
      %v2853 = vadd.f32 %v2614, %v2852
      %2854 = vmatmul.f32.gmra.mxu0 %v2542
      %v2855 = vpop.f32.mrf.mxu0
      %v2856 = vadd.f32 %v2614, %v2855
      %2857 = vmatmul.f32.gmra.mxu0 %v2543
      %v2858 = vpop.f32.mrf.mxu0
      %v2859 = vadd.f32 %v2614, %v2858
      %2860 = vmatmul.f32.gmra.mxu0 %v2544
      %v2861 = vpop.f32.mrf.mxu0
      %v2862 = vadd.f32 %v2614, %v2861
      %2863 = vmatmul.f32.gmra.mxu0 %v2545
      %v2864 = vpop.f32.mrf.mxu0
      %v2865 = vadd.f32 %v2614, %v2864
      %2866 = vmatmul.f32.gmra.mxu0 %v2546
      %v2867 = vpop.f32.mrf.mxu0
      %v2868 = vadd.f32 %v2614, %v2867
      %2869 = vmatmul.f32.gmra.mxu0 %v2547
      %v2870 = vpop.f32.mrf.mxu0
      %v2871 = vadd.f32 %v2614, %v2870
      %2872 = vmatmul.f32.gmra.mxu0 %v2548
      %v2873 = vpop.f32.mrf.mxu0
      %v2874 = vadd.f32 %v2614, %v2873
      %2875 = vmatmul.f32.gmra.mxu0 %v2549
      %v2876 = vpop.f32.mrf.mxu0
      %v2877 = vadd.f32 %v2614, %v2876
      %2878 = vmatmul.f32.gmra.mxu0 %v2550
      %v2879 = vpop.f32.mrf.mxu0
      %v2880 = vadd.f32 %v2614, %v2879
      %2881 = vmatmul.f32.gmra.mxu0 %v2551
      %v2882 = vpop.f32.mrf.mxu0
      %v2883 = vadd.f32 %v2614, %v2882
      %2884 = vmatmul.f32.gmra.mxu0 %v2552
      %v2885 = vpop.f32.mrf.mxu0
      %v2886 = vadd.f32 %v2614, %v2885
      %2887 = vmatmul.f32.gmra.mxu0 %v2553
      %v2888 = vpop.f32.mrf.mxu0
      %v2889 = vadd.f32 %v2614, %v2888
      %2890 = vmatmul.f32.gmra.mxu0 %v2554
      %v2891 = vpop.f32.mrf.mxu0
      %v2892 = vadd.f32 %v2614, %v2891
      %2893 = vmatmul.f32.gmra.mxu0 %v2555
      %v2894 = vpop.f32.mrf.mxu0
      %v2895 = vadd.f32 %v2614, %v2894
      %2896 = vmatmul.f32.gmra.mxu0 %v2556
      %v2897 = vpop.f32.mrf.mxu0
      %v2898 = vadd.f32 %v2614, %v2897
      %2899 = vmatmul.f32.gmra.mxu0 %v2557
      %v2900 = vpop.f32.mrf.mxu0
      %v2901 = vadd.f32 %v2614, %v2900
      %2902 = vmatmul.f32.gmra.mxu0 %v2558
      %v2903 = vpop.f32.mrf.mxu0
      %v2904 = vadd.f32 %v2614, %v2903
      %2905 = vmatmul.f32.gmra.mxu0 %v2559
      %v2906 = vpop.f32.mrf.mxu0
      %v2907 = vadd.f32 %v2614, %v2906
      %2908 = vmatmul.f32.gmra.mxu0 %v2560
      %v2909 = vpop.f32.mrf.mxu0
      %v2910 = vadd.f32 %v2614, %v2909
      %2911 = vmatmul.f32.gmra.mxu0 %v2561
      %v2912 = vpop.f32.mrf.mxu0
      %v2913 = vadd.f32 %v2614, %v2912
      %2914 = vmatmul.f32.gmra.mxu0 %v2562
      %v2915 = vpop.f32.mrf.mxu0
      %v2916 = vadd.f32 %v2614, %v2915
      %2917 = vmatmul.f32.gmra.mxu0 %v2563
      %v2918 = vpop.f32.mrf.mxu0
      %v2919 = vadd.f32 %v2614, %v2918
      %2920 = vmatmul.f32.gmra.mxu0 %v2564
      %v2921 = vpop.f32.mrf.mxu0
      %v2922 = vadd.f32 %v2614, %v2921
      %2923 = vmatmul.f32.gmra.mxu0 %v2565
      %v2924 = vpop.f32.mrf.mxu0
      %v2925 = vadd.f32 %v2614, %v2924
      %2926 = vmatmul.f32.gmra.mxu0 %v2566
      %v2927 = vpop.f32.mrf.mxu0
      %v2928 = vadd.f32 %v2614, %v2927
      %2929 = vmatmul.f32.gmra.mxu0 %v2567
      %v2930 = vpop.f32.mrf.mxu0
      %v2931 = vadd.f32 %v2614, %v2930
      %2932 = vmatmul.f32.gmra.mxu0 %v2568
      %v2933 = vpop.f32.mrf.mxu0
      %v2934 = vadd.f32 %v2614, %v2933
      %2935 = vmatmul.f32.gmra.mxu0 %v2569
      %v2936 = vpop.f32.mrf.mxu0
      %v2937 = vadd.f32 %v2614, %v2936
      %2938 = vmatmul.f32.gmra.mxu0 %v2570
      %v2939 = vpop.f32.mrf.mxu0
      %v2940 = vadd.f32 %v2614, %v2939
      %2941 = vmatmul.f32.gmra.mxu0 %v2571
      %v2942 = vpop.f32.mrf.mxu0
      %v2943 = vadd.f32 %v2614, %v2942
      %2944 = vmatmul.f32.gmra.mxu0 %v2572
      %v2945 = vpop.f32.mrf.mxu0
      %v2946 = vadd.f32 %v2614, %v2945
      %2947 = vmatmul.f32.gmra.mxu0 %v2573
      %v2948 = vpop.f32.mrf.mxu0
      %v2949 = vadd.f32 %v2614, %v2948
      %2950 = vmatmul.f32.gmra.mxu0 %v2574
      %v2951 = vpop.f32.mrf.mxu0
      %v2952 = vadd.f32 %v2614, %v2951
      %2953 = vmatmul.f32.gmra.mxu0 %v2575
      %v2954 = vpop.f32.mrf.mxu0
      %v2955 = vadd.f32 %v2614, %v2954
      %2956 = vmatmul.f32.gmra.mxu0 %v2576
      %v2957 = vpop.f32.mrf.mxu0
      %v2958 = vadd.f32 %v2614, %v2957
      %2959 = vmatmul.f32.gmra.mxu0 %v2577
      %v2960 = vpop.f32.mrf.mxu0
      %v2961 = vadd.f32 %v2614, %v2960
      %2962 = vmatmul.f32.gmra.mxu0 %v2578
      %v2963 = vpop.f32.mrf.mxu0
      %v2964 = vadd.f32 %v2614, %v2963
      %2965 = vmatmul.f32.gmra.mxu0 %v2579
      %v2966 = vpop.f32.mrf.mxu0
      %v2967 = vadd.f32 %v2614, %v2966
      %2968 = vmatmul.f32.gmra.mxu0 %v2580
      %v2969 = vpop.f32.mrf.mxu0
      %v2970 = vadd.f32 %v2614, %v2969
      %2971 = vmatmul.f32.gmra.mxu0 %v2581
      %v2972 = vpop.f32.mrf.mxu0
      %v2973 = vadd.f32 %v2614, %v2972
      %2974 = vmatmul.f32.gmra.mxu0 %v2582
      %v2975 = vpop.f32.mrf.mxu0
      %v2976 = vadd.f32 %v2614, %v2975
      %2977 = vmatmul.f32.gmra.mxu0 %v2583
      %v2978 = vpop.f32.mrf.mxu0
      %v2979 = vadd.f32 %v2614, %v2978
      %2980 = vmatmul.f32.gmra.mxu0 %v2584
      %v2981 = vpop.f32.mrf.mxu0
      %v2982 = vadd.f32 %v2614, %v2981
      %2983 = vmatmul.f32.gmra.mxu0 %v2585
      %v2984 = vpop.f32.mrf.mxu0
      %v2985 = vadd.f32 %v2614, %v2984
      %2986 = vmatmul.f32.gmra.mxu0 %v2586
      %v2987 = vpop.f32.mrf.mxu0
      %v2988 = vadd.f32 %v2614, %v2987
      %2989 = vmatmul.f32.gmra.mxu0 %v2587
      %v2990 = vpop.f32.mrf.mxu0
      %v2991 = vadd.f32 %v2614, %v2990
      %2992 = vmatmul.f32.gmra.mxu0 %v2588
      %v2993 = vpop.f32.mrf.mxu0
      %v2994 = vadd.f32 %v2614, %v2993
      %2995 = vmatmul.f32.gmra.mxu0 %v2589
      %v2996 = vpop.f32.mrf.mxu0
      %v2997 = vadd.f32 %v2614, %v2996
      %2998 = vmatmul.f32.gmra.mxu0 %v2590
      %v2999 = vpop.f32.mrf.mxu0
      %v3000 = vadd.f32 %v2614, %v2999
      %3001 = vmatmul.f32.gmra.mxu0 %v2591
      %v3002 = vpop.f32.mrf.mxu0
      %v3003 = vadd.f32 %v2614, %v3002
      %3004 = vmatmul.f32.gmra.mxu0 %v2592
      %v3005 = vpop.f32.mrf.mxu0
      %v3006 = vadd.f32 %v2614, %v3005
      %3007 = vmatmul.f32.gmra.mxu0 %v2593
      %v3008 = vpop.f32.mrf.mxu0
      %v3009 = vadd.f32 %v2614, %v3008
      %3010 = vmatmul.f32.gmra.mxu0 %v2594
      %v3011 = vpop.f32.mrf.mxu0
      %v3012 = vadd.f32 %v2614, %v3011
      %3013 = vmatmul.f32.gmra.mxu0 %v2595
      %v3014 = vpop.f32.mrf.mxu0
      %v3015 = vadd.f32 %v2614, %v3014
      %3016 = vdwg.mxu0
      %vm3017 = vcmask 7168
      %3018 = vst.msk [vmem:[%s336] sm:$0xff] %vm3017, %v2634
      %3019 = vst.msk [vmem:[%s336 + $0x8] sm:$0xff] %vm3017, %v2637
      %3020 = vst.msk [vmem:[%s336 + $0x10] sm:$0xff] %vm3017, %v2640
      %3021 = vst.msk [vmem:[%s336 + $0x18] sm:$0xff] %vm3017, %v2643
      %3022 = vst.msk [vmem:[%s336 + $0x20] sm:$0xff] %vm3017, %v2646
      %3023 = vst.msk [vmem:[%s336 + $0x28] sm:$0xff] %vm3017, %v2649
      %3024 = vst.msk [vmem:[%s336 + $0x30] sm:$0xff] %vm3017, %v2652
      %3025 = vst.msk [vmem:[%s336 + $0x38] sm:$0xff] %vm3017, %v2655
      %3026 = vst.msk [vmem:[%s336 + $0x40] sm:$0xff] %vm3017, %v2658
      %3027 = vst.msk [vmem:[%s336 + $0x48] sm:$0xff] %vm3017, %v2661
      %3028 = vst.msk [vmem:[%s336 + $0x50] sm:$0xff] %vm3017, %v2664
      %3029 = vst.msk [vmem:[%s336 + $0x58] sm:$0xff] %vm3017, %v2667
      %3030 = vst.msk [vmem:[%s336 + $0x60] sm:$0xff] %vm3017, %v2670
      %3031 = vst.msk [vmem:[%s336 + $0x68] sm:$0xff] %vm3017, %v2673
      %3032 = vst.msk [vmem:[%s336 + $0x70] sm:$0xff] %vm3017, %v2676
      %3033 = vst.msk [vmem:[%s336 + $0x78] sm:$0xff] %vm3017, %v2679
      %3034 = vst.msk [vmem:[%s336 + $0x80] sm:$0xff] %vm3017, %v2682
      %3035 = vst.msk [vmem:[%s336 + $0x88] sm:$0xff] %vm3017, %v2685
      %3036 = vst.msk [vmem:[%s336 + $0x90] sm:$0xff] %vm3017, %v2688
      %3037 = vst.msk [vmem:[%s336 + $0x98] sm:$0xff] %vm3017, %v2691
      %3038 = vst.msk [vmem:[%s336 + $0xa0] sm:$0xff] %vm3017, %v2694
      %3039 = vst.msk [vmem:[%s336 + $0xa8] sm:$0xff] %vm3017, %v2697
      %3040 = vst.msk [vmem:[%s336 + $0xb0] sm:$0xff] %vm3017, %v2700
      %3041 = vst.msk [vmem:[%s336 + $0xb8] sm:$0xff] %vm3017, %v2703
      %3042 = vst.msk [vmem:[%s336 + $0xc0] sm:$0xff] %vm3017, %v2706
      %3043 = vst.msk [vmem:[%s336 + $0xc8] sm:$0xff] %vm3017, %v2709
      %3044 = vst.msk [vmem:[%s336 + $0xd0] sm:$0xff] %vm3017, %v2712
      %3045 = vst.msk [vmem:[%s336 + $0xd8] sm:$0xff] %vm3017, %v2715
      %3046 = vst.msk [vmem:[%s336 + $0xe0] sm:$0xff] %vm3017, %v2718
      %3047 = vst.msk [vmem:[%s336 + $0xe8] sm:$0xff] %vm3017, %v2721
      %3048 = vst.msk [vmem:[%s336 + $0xf0] sm:$0xff] %vm3017, %v2724
      %3049 = vst.msk [vmem:[%s336 + $0xf8] sm:$0xff] %vm3017, %v2727
      %3050 = vst.msk [vmem:[%s336 + $0x100] sm:$0xff] %vm3017, %v2730
      %3051 = vst.msk [vmem:[%s336 + $0x108] sm:$0xff] %vm3017, %v2733
      %3052 = vst.msk [vmem:[%s336 + $0x110] sm:$0xff] %vm3017, %v2736
      %3053 = vst.msk [vmem:[%s336 + $0x118] sm:$0xff] %vm3017, %v2739
      %3054 = vst.msk [vmem:[%s336 + $0x120] sm:$0xff] %vm3017, %v2742
      %3055 = vst.msk [vmem:[%s336 + $0x128] sm:$0xff] %vm3017, %v2745
      %3056 = vst.msk [vmem:[%s336 + $0x130] sm:$0xff] %vm3017, %v2748
      %3057 = vst.msk [vmem:[%s336 + $0x138] sm:$0xff] %vm3017, %v2751
      %3058 = vst.msk [vmem:[%s336 + $0x140] sm:$0xff] %vm3017, %v2754
      %3059 = vst.msk [vmem:[%s336 + $0x148] sm:$0xff] %vm3017, %v2757
      %3060 = vst.msk [vmem:[%s336 + $0x150] sm:$0xff] %vm3017, %v2760
      %3061 = vst.msk [vmem:[%s336 + $0x158] sm:$0xff] %vm3017, %v2763
      %3062 = vst.msk [vmem:[%s336 + $0x160] sm:$0xff] %vm3017, %v2766
      %3063 = vst.msk [vmem:[%s336 + $0x168] sm:$0xff] %vm3017, %v2769
      %3064 = vst.msk [vmem:[%s336 + $0x170] sm:$0xff] %vm3017, %v2772
      %3065 = vst.msk [vmem:[%s336 + $0x178] sm:$0xff] %vm3017, %v2775
      %3066 = vst.msk [vmem:[%s336 + $0x180] sm:$0xff] %vm3017, %v2778
      %3067 = vst.msk [vmem:[%s336 + $0x188] sm:$0xff] %vm3017, %v2781
      %3068 = vst.msk [vmem:[%s336 + $0x190] sm:$0xff] %vm3017, %v2784
      %3069 = vst.msk [vmem:[%s336 + $0x198] sm:$0xff] %vm3017, %v2787
      %3070 = vst.msk [vmem:[%s336 + $0x1a0] sm:$0xff] %vm3017, %v2790
      %3071 = vst.msk [vmem:[%s336 + $0x1a8] sm:$0xff] %vm3017, %v2793
      %3072 = vst.msk [vmem:[%s336 + $0x1b0] sm:$0xff] %vm3017, %v2796
      %3073 = vst.msk [vmem:[%s336 + $0x1b8] sm:$0xff] %vm3017, %v2799
      %3074 = vst.msk [vmem:[%s336 + $0x1c0] sm:$0xff] %vm3017, %v2802
      %3075 = vst.msk [vmem:[%s336 + $0x1c8] sm:$0xff] %vm3017, %v2805
      %3076 = vst.msk [vmem:[%s336 + $0x1d0] sm:$0xff] %vm3017, %v2808
      %3077 = vst.msk [vmem:[%s336 + $0x1d8] sm:$0xff] %vm3017, %v2811
      %3078 = vst.msk [vmem:[%s336 + $0x1e0] sm:$0xff] %vm3017, %v2814
      %3079 = vst.msk [vmem:[%s336 + $0x1e8] sm:$0xff] %vm3017, %v2817
      %3080 = vst.msk [vmem:[%s336 + $0x1f0] sm:$0xff] %vm3017, %v2820
      %3081 = vst.msk [vmem:[%s336 + $0x1f8] sm:$0xff] %vm3017, %v2823
      %3082 = vst.msk [vmem:[%s336 + $0x200] sm:$0xff] %vm3017, %v2826
      %3083 = vst.msk [vmem:[%s336 + $0x208] sm:$0xff] %vm3017, %v2829
      %3084 = vst.msk [vmem:[%s336 + $0x210] sm:$0xff] %vm3017, %v2832
      %3085 = vst.msk [vmem:[%s336 + $0x218] sm:$0xff] %vm3017, %v2835
      %3086 = vst.msk [vmem:[%s336 + $0x220] sm:$0xff] %vm3017, %v2838
      %3087 = vst.msk [vmem:[%s336 + $0x228] sm:$0xff] %vm3017, %v2841
      %3088 = vst.msk [vmem:[%s336 + $0x230] sm:$0xff] %vm3017, %v2844
      %3089 = vst.msk [vmem:[%s336 + $0x238] sm:$0xff] %vm3017, %v2847
      %3090 = vst.msk [vmem:[%s336 + $0x240] sm:$0xff] %vm3017, %v2850
      %3091 = vst.msk [vmem:[%s336 + $0x248] sm:$0xff] %vm3017, %v2853
      %3092 = vst.msk [vmem:[%s336 + $0x250] sm:$0xff] %vm3017, %v2856
      %3093 = vst.msk [vmem:[%s336 + $0x258] sm:$0xff] %vm3017, %v2859
      %3094 = vst.msk [vmem:[%s336 + $0x260] sm:$0xff] %vm3017, %v2862
      %3095 = vst.msk [vmem:[%s336 + $0x268] sm:$0xff] %vm3017, %v2865
      %3096 = vst.msk [vmem:[%s336 + $0x270] sm:$0xff] %vm3017, %v2868
      %3097 = vst.msk [vmem:[%s336 + $0x278] sm:$0xff] %vm3017, %v2871
      %3098 = vst.msk [vmem:[%s336 + $0x280] sm:$0xff] %vm3017, %v2874
      %3099 = vst.msk [vmem:[%s336 + $0x288] sm:$0xff] %vm3017, %v2877
      %3100 = vst.msk [vmem:[%s336 + $0x290] sm:$0xff] %vm3017, %v2880
      %3101 = vst.msk [vmem:[%s336 + $0x298] sm:$0xff] %vm3017, %v2883
      %3102 = vst.msk [vmem:[%s336 + $0x2a0] sm:$0xff] %vm3017, %v2886
      %3103 = vst.msk [vmem:[%s336 + $0x2a8] sm:$0xff] %vm3017, %v2889
      %3104 = vst.msk [vmem:[%s336 + $0x2b0] sm:$0xff] %vm3017, %v2892
      %3105 = vst.msk [vmem:[%s336 + $0x2b8] sm:$0xff] %vm3017, %v2895
      %3106 = vst.msk [vmem:[%s336 + $0x2c0] sm:$0xff] %vm3017, %v2898
      %3107 = vst.msk [vmem:[%s336 + $0x2c8] sm:$0xff] %vm3017, %v2901
      %3108 = vst.msk [vmem:[%s336 + $0x2d0] sm:$0xff] %vm3017, %v2904
      %3109 = vst.msk [vmem:[%s336 + $0x2d8] sm:$0xff] %vm3017, %v2907
      %3110 = vst.msk [vmem:[%s336 + $0x2e0] sm:$0xff] %vm3017, %v2910
      %3111 = vst.msk [vmem:[%s336 + $0x2e8] sm:$0xff] %vm3017, %v2913
      %3112 = vst.msk [vmem:[%s336 + $0x2f0] sm:$0xff] %vm3017, %v2916
      %3113 = vst.msk [vmem:[%s336 + $0x2f8] sm:$0xff] %vm3017, %v2919
      %3114 = vst.msk [vmem:[%s336 + $0x300] sm:$0xff] %vm3017, %v2922
      %3115 = vst.msk [vmem:[%s336 + $0x308] sm:$0xff] %vm3017, %v2925
      %3116 = vst.msk [vmem:[%s336 + $0x310] sm:$0xff] %vm3017, %v2928
      %3117 = vst.msk [vmem:[%s336 + $0x318] sm:$0xff] %vm3017, %v2931
      %3118 = vst.msk [vmem:[%s336 + $0x320] sm:$0xff] %vm3017, %v2934
      %3119 = vst.msk [vmem:[%s336 + $0x328] sm:$0xff] %vm3017, %v2937
      %3120 = vst.msk [vmem:[%s336 + $0x330] sm:$0xff] %vm3017, %v2940
      %3121 = vst.msk [vmem:[%s336 + $0x338] sm:$0xff] %vm3017, %v2943
      %3122 = vst.msk [vmem:[%s336 + $0x340] sm:$0xff] %vm3017, %v2946
      %3123 = vst.msk [vmem:[%s336 + $0x348] sm:$0xff] %vm3017, %v2949
      %3124 = vst.msk [vmem:[%s336 + $0x350] sm:$0xff] %vm3017, %v2952
      %3125 = vst.msk [vmem:[%s336 + $0x358] sm:$0xff] %vm3017, %v2955
      %3126 = vst.msk [vmem:[%s336 + $0x360] sm:$0xff] %vm3017, %v2958
      %3127 = vst.msk [vmem:[%s336 + $0x368] sm:$0xff] %vm3017, %v2961
      %3128 = vst.msk [vmem:[%s336 + $0x370] sm:$0xff] %vm3017, %v2964
      %3129 = vst.msk [vmem:[%s336 + $0x378] sm:$0xff] %vm3017, %v2967
      %3130 = vst.msk [vmem:[%s336 + $0x380] sm:$0xff] %vm3017, %v2970
      %3131 = vst.msk [vmem:[%s336 + $0x388] sm:$0xff] %vm3017, %v2973
      %3132 = vst.msk [vmem:[%s336 + $0x390] sm:$0xff] %vm3017, %v2976
      %3133 = vst.msk [vmem:[%s336 + $0x398] sm:$0xff] %vm3017, %v2979
      %3134 = vst.msk [vmem:[%s336 + $0x3a0] sm:$0xff] %vm3017, %v2982
      %3135 = vst.msk [vmem:[%s336 + $0x3a8] sm:$0xff] %vm3017, %v2985
      %3136 = vst.msk [vmem:[%s336 + $0x3b0] sm:$0xff] %vm3017, %v2988
      %3137 = vst.msk [vmem:[%s336 + $0x3b8] sm:$0xff] %vm3017, %v2991
      %3138 = vst.msk [vmem:[%s336 + $0x3c0] sm:$0xff] %vm3017, %v2994
      %3139 = vst.msk [vmem:[%s336 + $0x3c8] sm:$0xff] %vm3017, %v2997
      %3140 = vst.msk [vmem:[%s336 + $0x3d0] sm:$0xff] %vm3017, %v3000
      %3141 = vst.msk [vmem:[%s336 + $0x3d8] sm:$0xff] %vm3017, %v3003
      %3142 = vst.msk [vmem:[%s336 + $0x3e0] sm:$0xff] %vm3017, %v3006
      %3143 = vst.msk [vmem:[%s336 + $0x3e8] sm:$0xff] %vm3017, %v3009
      %3144 = vst.msk [vmem:[%s336 + $0x3f0] sm:$0xff] %vm3017, %v3012
      %3145 = vst.msk [vmem:[%s336 + $0x3f8] sm:$0xff] %vm3017, %v3015
      %s3146 = smul.u32 128, %s22
      %p3147 = scmp.lt.s32.totalorder %s3146, 639
      %s3148 = scalar_select %p3147, %s3146, 639
      %s3149 = smul.addr %s3148, 8
      %s3150 = scalar_lea.vmem %s9, %s3149
      // Predicated region
      $region57: #{tpu_custom_call.1} parent=55 // pred_check
        %p3151 = pneg %p234
      $region58: #{tpu_custom_call.1} parent=55 // pred_check_branch
        %3153 = sbr.rel (%p3151) target = $region60
      $region59: #{tpu_custom_call.1} parent=55 // pred_region
        %s3154 = smul.u32 128, %s22
      $region60: #{tpu_custom_call.1} parent=55 // pred_fallthru
        _
    $region56: #{tpu_custom_call.1} parent=5 // pred_fallthru
      _
    %p3155 = scmp.le.s32.totalorder 2, %s17
    // Predicated region
    $region61: #{tpu_custom_call.1} parent=5 // pred_check
      %p3156 = pneg %p3155
    $region62: #{tpu_custom_call.1} parent=5 // pred_check_branch
      %3158 = sbr.rel (%p3156) target = $region64
    $region63: #{tpu_custom_call.1} parent=5 // pred_region
      %s3159 = ssub.s32 %s17, 2
      // Predicated region
      $region65: #{tpu_custom_call.1} parent=63 // pred_check
        %p3160 = pneg %p240
      $region66: #{tpu_custom_call.1} parent=63 // pred_check_branch
        %3162 = sbr.rel (%p3160) target = $region68
      $region67: #{tpu_custom_call.1} parent=63 // pred_region
        %s3163 = smul.u32 128, %s23
        %p3164 = scmp.lt.s32.totalorder %s3163, 639
        %s3165 = scalar_select %p3164, %s3163, 639
        %s3166 = smul.addr %s3165, 8
        %s3167 = scalar_lea.vmem %s9, %s3166
      $region68: #{tpu_custom_call.1} parent=63 // pred_fallthru
        _
    $region64: #{tpu_custom_call.1} parent=5 // pred_fallthru
      _
  $region6: #{tpu_custom_call.1} parent=0 // loop_footer
    %s21 = sadd.s32 1, %s17
  $region7: #{tpu_custom_call.1} parent=0 // loop_footer_branch
    %16 = sbr.rel target = $region3
  $region8: #{tpu_custom_call.1} parent=0 // loop_exit
    _

</llo_original>
